<compile_context>
chip_gen: v7x
topology: tpu7x:2x2x1
jax: 0.10.0
libtpu: 0.0.40
codegen_flags: <defaults>
</compile_context>

<pallas_src>
import functools

import jax
import jax.numpy as jnp
from jax.experimental import pallas as pl
from jax.experimental.pallas import tpu as pltpu


def _round_up(v: int, m: int) -> int:
    return (v + m - 1) // m * m


def _pick_bt(n: int) -> int:
    """Largest batch tile in {8,4,2,1} dividing N while keeping >= 2 grid programs."""
    for bt in (8, 4, 2, 1):
        if n % bt == 0 and n // bt >= 2:
            return bt
    return 1


def _pick_hc(h: int, w: int) -> int:
    """Largest divisor of H keeping the per-chunk matmul M-dim (Hc*W) near ~128 rows."""
    target = max(1, 128 // max(w, 1))
    hc = 1
    for c in range(1, h + 1):
        if h % c == 0 and c <= target:
            hc = c
    return hc


# ----------------------------------------------------------------------------
# Fused kernel: (im2col'd) conv3x3 + bias + ReLU + mean-over-H + Linear + softmax.
# One block of Bt images per grid step; everything is a flat 2-D lane-dense ref.
# ----------------------------------------------------------------------------
def _fused_recognizer_kernel(x_ref, wconv_ref, bconv_ref, wcls_ref, bcls_ref,
                             o_ref, *, Bt, H, W, Hc):
    # x_ref    : [Bt*H*W, Kc]   bf16  im2col activations (kh-major, kw, cin in lanes)
    # wconv_ref: [Kc, Cpad]     bf16  fused conv-tap weight
    # bconv_ref: [1, Cpad]      f32
    # wcls_ref : [Cpad, Kpad]   bf16
    # bcls_ref : [1, Kpad]      f32   (-1e30 in padded class lanes)
    # o_ref    : [Bt*W, Kpad]   f32   softmax probabilities
    Cpad = wconv_ref.shape[-1]
    HW = H * W
    n_chunks = H // Hc

    wconv = wconv_ref[...]                                   # held across all chunks
    bconv = bconv_ref[...]
    wcls = wcls_ref[...]
    bcls = bcls_ref[...]

    for b in range(Bt):                                      # static, small
        # ---- Encoder + pooling: chunked conv matmul, bias+ReLU, sum over H -----
        pooled = jnp.zeros((W, Cpad), jnp.float32)
        for c in range(n_chunks):                            # static unrolled
            row0 = b * HW + c * Hc * W
            lhs = x_ref[pl.ds(row0, Hc * W), :]              # [Hc*W, Kc] bf16
            conv = jnp.dot(lhs, wconv,
                           preferred_element_type=jnp.float32)   # [Hc*W, Cpad] f32
            act = jnp.maximum(conv + bconv, 0.0)
            for hh in range(Hc):                             # fuse pooling, no scratch
                pooled = pooled + act[hh * W:(hh + 1) * W, :]
        pooled = (pooled * (1.0 / H)).astype(jnp.bfloat16)   # [W, Cpad] bf16 for MXU

        # ---- Decoder: Linear -> exact softmax over 128-padded, masked classes ---
        logits = jnp.dot(pooled, wcls,
                         preferred_element_type=jnp.float32) + bcls   # f32
        m = jnp.max(logits, axis=-1, keepdims=True)
        e = jnp.exp(logits - m)
        s = jnp.sum(e, axis=-1, keepdims=True)
        o_ref[pl.ds(b * W, W), :] = e / s


# ----------------------------------------------------------------------------
# Wrapper: layout / padding plumbing + pallas_call
# ----------------------------------------------------------------------------
@jax.jit
def base_recognizer_forward(x_nchw, w_conv, b_conv, w_cls, b_cls):
    """x_nchw: [N, Cin, H, W] (PyTorch layout). Returns [N, W, num_classes]."""
    N, Cin, H, W = x_nchw.shape
    Cout = w_conv.shape[0]
    K = w_cls.shape[1]
    Cpad = _round_up(Cout, 128)
    Kpad = _round_up(K, 128)
    Kc = _round_up(9 * Cin, 32)       # fused-tap contraction depth (27 -> 32 for Cin=3)
    Bt = _pick_bt(N)
    Hc = _pick_hc(H, W)

    # --- im2col: cheap for small Cin; gives a lane-dense LHS and one fused tap ---
    x_nhwc = jnp.transpose(x_nchw, (0, 2, 3, 1))
    x_pad = jnp.pad(x_nhwc, ((0, 0), (1, 1), (1, 1), (0, 0)))
    patches = [x_pad[:, kh:kh + H, kw:kw + W, :]
               for kh in range(3) for kw in range(3)]
    x_im2col = jnp.concatenate(patches, axis=-1)              # [N, H, W, 9*Cin]
    x_im2col = jnp.pad(x_im2col, ((0, 0), (0, 0), (0, 0), (0, Kc - 9 * Cin)))
    x_flat = x_im2col.reshape(N * H * W, Kc).astype(jnp.bfloat16)

    # --- conv weight OIHW -> fused [Kc, Cpad] bf16 (kh-major, kw, cin rows) ------
    w_mat = jnp.transpose(w_conv, (2, 3, 1, 0)).reshape(9 * Cin, Cout)
    w_conv_p = jnp.zeros((Kc, Cpad), jnp.float32).at[:9 * Cin, :Cout].set(w_mat)
    w_conv_p = w_conv_p.astype(jnp.bfloat16)
    b_conv_p = jnp.zeros((1, Cpad), jnp.float32).at[0, :Cout].set(b_conv)

    # --- classifier padded to dense 128 lanes; padded classes masked via f32 bias -
    w_cls_p = jnp.zeros((Cpad, Kpad), jnp.float32).at[:Cout, :K].set(w_cls)
    w_cls_p = w_cls_p.astype(jnp.bfloat16)
    b_cls_p = jnp.full((1, Kpad), -1e30, jnp.float32).at[0, :K].set(b_cls)

    kernel = functools.partial(_fused_recognizer_kernel, Bt=Bt, H=H, W=W, Hc=Hc)
    flops = 2 * N * H * W * Kc * Cpad + 2 * N * W * Cpad * Kpad
    bytes_accessed = (x_flat.size * 2 + N * W * Kpad * 4
                      + w_conv_p.size * 2 + w_cls_p.size * 2
                      + b_conv_p.size * 4 + b_cls_p.size * 4)

    out_flat = pl.pallas_call(
        kernel,
        out_shape=jax.ShapeDtypeStruct((N * W, Kpad), jnp.float32),
        grid=(N // Bt,),
        in_specs=[
            pl.BlockSpec((Bt * H * W, Kc), lambda n: (n, 0)),
            pl.BlockSpec((Kc, Cpad), lambda n: (0, 0)),
            pl.BlockSpec((1, Cpad), lambda n: (0, 0)),
            pl.BlockSpec((Cpad, Kpad), lambda n: (0, 0)),
            pl.BlockSpec((1, Kpad), lambda n: (0, 0)),
        ],
        out_specs=pl.BlockSpec((Bt * W, Kpad), lambda n: (n, 0)),
        compiler_params=pltpu.CompilerParams(
            dimension_semantics=("parallel",),
            vmem_limit_bytes=32 * 1024 * 1024,
        ),
        cost_estimate=pl.CostEstimate(
            flops=flops,
            transcendentals=N * W * Kpad,
            bytes_accessed=bytes_accessed,
        ),
    )(x_flat, w_conv_p, b_conv_p, w_cls_p, b_cls_p)

    return out_flat.reshape(N, W, Kpad)[:, :, :K]


# ----------------------------------------------------------------------------
# Pure-JAX reference of the same instantiation (for correctness checking)
# ----------------------------------------------------------------------------
def _reference_forward(x_nchw, w_conv, b_conv, w_cls, b_cls):
    x = jnp.transpose(x_nchw, (0, 2, 3, 1)).astype(jnp.float32)
    w_hwio = jnp.transpose(w_conv, (2, 3, 1, 0)).astype(jnp.float32)
    feat = jax.lax.conv_general_dilated(
        x, w_hwio, window_strides=(1, 1), padding=((1, 1), (1, 1)),
        dimension_numbers=("NHWC", "HWIO", "NHWC"))
    feat = jnp.maximum(feat + b_conv[None, None, None, :], 0.0)
    pooled = jnp.mean(feat, axis=1)                       # mean over H
    logits = pooled @ w_cls + b_cls[None, None, :]
    return jax.nn.softmax(logits, axis=-1)


# ----------------------------------------------------------------------------
# BaseRecognizer wrapper
# ----------------------------------------------------------------------------
class BaseRecognizerPallas:
    def __init__(self, in_channels=3, enc_channels=32, num_classes=37, key=None):
        if key is None:
            key = jax.random.PRNGKey(42)
        k1, k2, k3, k4 = jax.random.split(key, 4)
        # Deterministic synthetic parameters (shapes follow the module's submodules).
        self.w_conv = 0.05 * jax.random.normal(
            k1, (enc_channels, in_channels, 3, 3), jnp.float32)   # Conv2d weight (OIHW)
        self.b_conv = 0.01 * jax.random.normal(k2, (enc_channels,), jnp.float32)
        self.w_cls = 0.05 * jax.random.normal(
            k3, (enc_channels, num_classes), jnp.float32)          # Linear weight
        self.b_cls = 0.01 * jax.random.normal(k4, (num_classes,), jnp.float32)
        # TODO(synk): Transform branch (e.g. TPS/STN) not instantiated (config Transform=None).

    def __call__(self, x_nchw, data=None):
        # use_transform=False; decoder `data` kwarg unused at inference for the CTC head.
        return base_recognizer_forward(
            x_nchw, self.w_conv, self.b_conv, self.w_cls, self.b_cls)


if __name__ == "__main__":
    key = jax.random.PRNGKey(0)
    x = jax.random.normal(key, (2, 3, 16, 64), jnp.float32)   # NCHW, like PyTorch

    model = BaseRecognizerPallas(in_channels=3, enc_channels=32, num_classes=37)
    out = jax.block_until_ready(model(x))
    assert out.shape == (2, 64, 37), out.shape

    # softmax rows sum to one (exact in-kernel normalization)
    assert jnp.allclose(jnp.sum(out, axis=-1), 1.0, atol=1e-3)

    # matches the pure-JAX f32 reference of the same module (bf16 MXU inputs)
    ref = jax.block_until_ready(
        _reference_forward(x, model.w_conv, model.b_conv, model.w_cls, model.b_cls))
    max_err = float(jnp.max(jnp.abs(out - ref)))
    assert max_err < 5e-3, max_err

    print("KERNEL_OK")
</pallas_src>

<mosaic_0001>
module attributes {stable_mosaic.version = 11 : i64} {
  func.func @_fused_recognizer_kernel(%arg0: i32, %arg1: memref<1024x32xbf16, #tpu.memory_space<vmem>>, %arg2: memref<32x128xbf16, #tpu.memory_space<vmem>>, %arg3: memref<1x128xf32, #tpu.memory_space<vmem>>, %arg4: memref<128x128xbf16, #tpu.memory_space<vmem>>, %arg5: memref<1x128xf32, #tpu.memory_space<vmem>>, %arg6: memref<64x128xf32, #tpu.memory_space<vmem>>) attributes {dimension_semantics = [#tpu.dimension_semantics<parallel>], iteration_bounds = array<i64: 2>, scalar_prefetch = 0 : i64, scratch_operands = 0 : i64, tpu.core_type = #tpu.core_type<tc>, window_params = [{transform_indices = @transform_0, window_bounds = array<i64: 1024, 32>}, {pipeline_mode = #tpu.pipeline_mode<synchronous>, transform_indices = @transform_1, window_bounds = array<i64: 32, 128>}, {pipeline_mode = #tpu.pipeline_mode<synchronous>, transform_indices = @transform_2, window_bounds = array<i64: 1, 128>}, {pipeline_mode = #tpu.pipeline_mode<synchronous>, transform_indices = @transform_3, window_bounds = array<i64: 128, 128>}, {pipeline_mode = #tpu.pipeline_mode<synchronous>, transform_indices = @transform_4, window_bounds = array<i64: 1, 128>}, {transform_indices = @transform_5, window_bounds = array<i64: 64, 128>}]} {
    %c0 = arith.constant 0 : index
    %c0_0 = arith.constant 0 : index
    %0 = vector.load %arg2[%c0, %c0_0] : memref<32x128xbf16, #tpu.memory_space<vmem>>, vector<32x128xbf16>
    %c0_1 = arith.constant 0 : index
    %c0_2 = arith.constant 0 : index
    %1 = vector.load %arg3[%c0_1, %c0_2] : memref<1x128xf32, #tpu.memory_space<vmem>>, vector<1x128xf32>
    %c0_3 = arith.constant 0 : index
    %c0_4 = arith.constant 0 : index
    %2 = vector.load %arg4[%c0_3, %c0_4] : memref<128x128xbf16, #tpu.memory_space<vmem>>, vector<128x128xbf16>
    %c0_5 = arith.constant 0 : index
    %c0_6 = arith.constant 0 : index
    %3 = vector.load %arg5[%c0_5, %c0_6] : memref<1x128xf32, #tpu.memory_space<vmem>>, vector<1x128xf32>
    %cst = arith.constant 0.000000e+00 : f32
    %4 = vector.broadcast %cst : f32 to vector<64x128xf32>
    %c0_7 = arith.constant 0 : index
    %c0_8 = arith.constant 0 : index
    %5 = vector.load %arg1[%c0_7, %c0_8] : memref<1024x32xbf16, #tpu.memory_space<vmem>>, vector<128x32xbf16>
    %cst_9 = arith.constant dense<0.000000e+00> : vector<128x128xf32>
    %6 = tpu.matmul %5, %0, %cst_9 {dimension_numbers = #tpu.dot_dimension_numbers<[1], [0], [0], [1], [0, 0, 1, 1], [], []>} : vector<128x32xbf16>, vector<32x128xbf16>, vector<128x128xf32> -> vector<128x128xf32>
    %7 = vector.broadcast %1 : vector<1x128xf32> to vector<128x128xf32>
    %8 = arith.addf %6, %7 : vector<128x128xf32>
    %cst_10 = arith.constant 0.000000e+00 : f32
    %9 = vector.broadcast %cst_10 : f32 to vector<128x128xf32>
    %10 = arith.maximumf %8, %9 : vector<128x128xf32>
    %11 = vector.extract_strided_slice %10 {offsets = [0, 0], sizes = [64, 128], strides = [1, 1]} : vector<128x128xf32> to vector<64x128xf32>
    %12 = arith.addf %4, %11 : vector<64x128xf32>
    %13 = vector.extract_strided_slice %10 {offsets = [64, 0], sizes = [64, 128], strides = [1, 1]} : vector<128x128xf32> to vector<64x128xf32>
    %14 = arith.addf %12, %13 : vector<64x128xf32>
    %c128 = arith.constant 128 : index
    %c0_11 = arith.constant 0 : index
    %15 = vector.load %arg1[%c128, %c0_11] : memref<1024x32xbf16, #tpu.memory_space<vmem>>, vector<128x32xbf16>
    %cst_12 = arith.constant dense<0.000000e+00> : vector<128x128xf32>
    %16 = tpu.matmul %15, %0, %cst_12 {dimension_numbers = #tpu.dot_dimension_numbers<[1], [0], [0], [1], [0, 0, 1, 1], [], []>} : vector<128x32xbf16>, vector<32x128xbf16>, vector<128x128xf32> -> vector<128x128xf32>
    %17 = vector.broadcast %1 : vector<1x128xf32> to vector<128x128xf32>
    %18 = arith.addf %16, %17 : vector<128x128xf32>
    %cst_13 = arith.constant 0.000000e+00 : f32
    %19 = vector.broadcast %cst_13 : f32 to vector<128x128xf32>
    %20 = arith.maximumf %18, %19 : vector<128x128xf32>
    %21 = vector.extract_strided_slice %20 {offsets = [0, 0], sizes = [64, 128], strides = [1, 1]} : vector<128x128xf32> to vector<64x128xf32>
    %22 = arith.addf %14, %21 : vector<64x128xf32>
    %23 = vector.extract_strided_slice %20 {offsets = [64, 0], sizes = [64, 128], strides = [1, 1]} : vector<128x128xf32> to vector<64x128xf32>
    %24 = arith.addf %22, %23 : vector<64x128xf32>
    %c256 = arith.constant 256 : index
    %c0_14 = arith.constant 0 : index
    %25 = vector.load %arg1[%c256, %c0_14] : memref<1024x32xbf16, #tpu.memory_space<vmem>>, vector<128x32xbf16>
    %cst_15 = arith.constant dense<0.000000e+00> : vector<128x128xf32>
    %26 = tpu.matmul %25, %0, %cst_15 {dimension_numbers = #tpu.dot_dimension_numbers<[1], [0], [0], [1], [0, 0, 1, 1], [], []>} : vector<128x32xbf16>, vector<32x128xbf16>, vector<128x128xf32> -> vector<128x128xf32>
    %27 = vector.broadcast %1 : vector<1x128xf32> to vector<128x128xf32>
    %28 = arith.addf %26, %27 : vector<128x128xf32>
    %cst_16 = arith.constant 0.000000e+00 : f32
    %29 = vector.broadcast %cst_16 : f32 to vector<128x128xf32>
    %30 = arith.maximumf %28, %29 : vector<128x128xf32>
    %31 = vector.extract_strided_slice %30 {offsets = [0, 0], sizes = [64, 128], strides = [1, 1]} : vector<128x128xf32> to vector<64x128xf32>
    %32 = arith.addf %24, %31 : vector<64x128xf32>
    %33 = vector.extract_strided_slice %30 {offsets = [64, 0], sizes = [64, 128], strides = [1, 1]} : vector<128x128xf32> to vector<64x128xf32>
    %34 = arith.addf %32, %33 : vector<64x128xf32>
    %c384 = arith.constant 384 : index
    %c0_17 = arith.constant 0 : index
    %35 = vector.load %arg1[%c384, %c0_17] : memref<1024x32xbf16, #tpu.memory_space<vmem>>, vector<128x32xbf16>
    %cst_18 = arith.constant dense<0.000000e+00> : vector<128x128xf32>
    %36 = tpu.matmul %35, %0, %cst_18 {dimension_numbers = #tpu.dot_dimension_numbers<[1], [0], [0], [1], [0, 0, 1, 1], [], []>} : vector<128x32xbf16>, vector<32x128xbf16>, vector<128x128xf32> -> vector<128x128xf32>
    %37 = vector.broadcast %1 : vector<1x128xf32> to vector<128x128xf32>
    %38 = arith.addf %36, %37 : vector<128x128xf32>
    %cst_19 = arith.constant 0.000000e+00 : f32
    %39 = vector.broadcast %cst_19 : f32 to vector<128x128xf32>
    %40 = arith.maximumf %38, %39 : vector<128x128xf32>
    %41 = vector.extract_strided_slice %40 {offsets = [0, 0], sizes = [64, 128], strides = [1, 1]} : vector<128x128xf32> to vector<64x128xf32>
    %42 = arith.addf %34, %41 : vector<64x128xf32>
    %43 = vector.extract_strided_slice %40 {offsets = [64, 0], sizes = [64, 128], strides = [1, 1]} : vector<128x128xf32> to vector<64x128xf32>
    %44 = arith.addf %42, %43 : vector<64x128xf32>
    %c512 = arith.constant 512 : index
    %c0_20 = arith.constant 0 : index
    %45 = vector.load %arg1[%c512, %c0_20] : memref<1024x32xbf16, #tpu.memory_space<vmem>>, vector<128x32xbf16>
    %cst_21 = arith.constant dense<0.000000e+00> : vector<128x128xf32>
    %46 = tpu.matmul %45, %0, %cst_21 {dimension_numbers = #tpu.dot_dimension_numbers<[1], [0], [0], [1], [0, 0, 1, 1], [], []>} : vector<128x32xbf16>, vector<32x128xbf16>, vector<128x128xf32> -> vector<128x128xf32>
    %47 = vector.broadcast %1 : vector<1x128xf32> to vector<128x128xf32>
    %48 = arith.addf %46, %47 : vector<128x128xf32>
    %cst_22 = arith.constant 0.000000e+00 : f32
    %49 = vector.broadcast %cst_22 : f32 to vector<128x128xf32>
    %50 = arith.maximumf %48, %49 : vector<128x128xf32>
    %51 = vector.extract_strided_slice %50 {offsets = [0, 0], sizes = [64, 128], strides = [1, 1]} : vector<128x128xf32> to vector<64x128xf32>
    %52 = arith.addf %44, %51 : vector<64x128xf32>
    %53 = vector.extract_strided_slice %50 {offsets = [64, 0], sizes = [64, 128], strides = [1, 1]} : vector<128x128xf32> to vector<64x128xf32>
    %54 = arith.addf %52, %53 : vector<64x128xf32>
    %c640 = arith.constant 640 : index
    %c0_23 = arith.constant 0 : index
    %55 = vector.load %arg1[%c640, %c0_23] : memref<1024x32xbf16, #tpu.memory_space<vmem>>, vector<128x32xbf16>
    %cst_24 = arith.constant dense<0.000000e+00> : vector<128x128xf32>
    %56 = tpu.matmul %55, %0, %cst_24 {dimension_numbers = #tpu.dot_dimension_numbers<[1], [0], [0], [1], [0, 0, 1, 1], [], []>} : vector<128x32xbf16>, vector<32x128xbf16>, vector<128x128xf32> -> vector<128x128xf32>
    %57 = vector.broadcast %1 : vector<1x128xf32> to vector<128x128xf32>
    %58 = arith.addf %56, %57 : vector<128x128xf32>
    %cst_25 = arith.constant 0.000000e+00 : f32
    %59 = vector.broadcast %cst_25 : f32 to vector<128x128xf32>
    %60 = arith.maximumf %58, %59 : vector<128x128xf32>
    %61 = vector.extract_strided_slice %60 {offsets = [0, 0], sizes = [64, 128], strides = [1, 1]} : vector<128x128xf32> to vector<64x128xf32>
    %62 = arith.addf %54, %61 : vector<64x128xf32>
    %63 = vector.extract_strided_slice %60 {offsets = [64, 0], sizes = [64, 128], strides = [1, 1]} : vector<128x128xf32> to vector<64x128xf32>
    %64 = arith.addf %62, %63 : vector<64x128xf32>
    %c768 = arith.constant 768 : index
    %c0_26 = arith.constant 0 : index
    %65 = vector.load %arg1[%c768, %c0_26] : memref<1024x32xbf16, #tpu.memory_space<vmem>>, vector<128x32xbf16>
    %cst_27 = arith.constant dense<0.000000e+00> : vector<128x128xf32>
    %66 = tpu.matmul %65, %0, %cst_27 {dimension_numbers = #tpu.dot_dimension_numbers<[1], [0], [0], [1], [0, 0, 1, 1], [], []>} : vector<128x32xbf16>, vector<32x128xbf16>, vector<128x128xf32> -> vector<128x128xf32>
    %67 = vector.broadcast %1 : vector<1x128xf32> to vector<128x128xf32>
    %68 = arith.addf %66, %67 : vector<128x128xf32>
    %cst_28 = arith.constant 0.000000e+00 : f32
    %69 = vector.broadcast %cst_28 : f32 to vector<128x128xf32>
    %70 = arith.maximumf %68, %69 : vector<128x128xf32>
    %71 = vector.extract_strided_slice %70 {offsets = [0, 0], sizes = [64, 128], strides = [1, 1]} : vector<128x128xf32> to vector<64x128xf32>
    %72 = arith.addf %64, %71 : vector<64x128xf32>
    %73 = vector.extract_strided_slice %70 {offsets = [64, 0], sizes = [64, 128], strides = [1, 1]} : vector<128x128xf32> to vector<64x128xf32>
    %74 = arith.addf %72, %73 : vector<64x128xf32>
    %c896 = arith.constant 896 : index
    %c0_29 = arith.constant 0 : index
    %75 = vector.load %arg1[%c896, %c0_29] : memref<1024x32xbf16, #tpu.memory_space<vmem>>, vector<128x32xbf16>
    %cst_30 = arith.constant dense<0.000000e+00> : vector<128x128xf32>
    %76 = tpu.matmul %75, %0, %cst_30 {dimension_numbers = #tpu.dot_dimension_numbers<[1], [0], [0], [1], [0, 0, 1, 1], [], []>} : vector<128x32xbf16>, vector<32x128xbf16>, vector<128x128xf32> -> vector<128x128xf32>
    %77 = vector.broadcast %1 : vector<1x128xf32> to vector<128x128xf32>
    %78 = arith.addf %76, %77 : vector<128x128xf32>
    %cst_31 = arith.constant 0.000000e+00 : f32
    %79 = vector.broadcast %cst_31 : f32 to vector<128x128xf32>
    %80 = arith.maximumf %78, %79 : vector<128x128xf32>
    %81 = vector.extract_strided_slice %80 {offsets = [0, 0], sizes = [64, 128], strides = [1, 1]} : vector<128x128xf32> to vector<64x128xf32>
    %82 = arith.addf %74, %81 : vector<64x128xf32>
    %83 = vector.extract_strided_slice %80 {offsets = [64, 0], sizes = [64, 128], strides = [1, 1]} : vector<128x128xf32> to vector<64x128xf32>
    %84 = arith.addf %82, %83 : vector<64x128xf32>
    %cst_32 = arith.constant 6.250000e-02 : f32
    %85 = vector.broadcast %cst_32 : f32 to vector<64x128xf32>
    %86 = arith.mulf %84, %85 : vector<64x128xf32>
    %87 = arith.truncf %86 : vector<64x128xf32> to vector<64x128xbf16>
    %cst_33 = arith.constant dense<0.000000e+00> : vector<64x128xf32>
    %88 = tpu.matmul %87, %2, %cst_33 {dimension_numbers = #tpu.dot_dimension_numbers<[1], [0], [0], [1], [0, 0, 1, 1], [], []>} : vector<64x128xbf16>, vector<128x128xbf16>, vector<64x128xf32> -> vector<64x128xf32>
    %89 = vector.broadcast %3 : vector<1x128xf32> to vector<64x128xf32>
    %90 = arith.addf %88, %89 : vector<64x128xf32>
    %cst_34 = arith.constant dense<0xFF800000> : vector<64xf32>
    %91 = vector.multi_reduction <maximumf>, %90, %cst_34 [1] : vector<64x128xf32> to vector<64xf32>
    %92 = vector.shape_cast %91 : vector<64xf32> to vector<64x1xf32>
    %93 = vector.broadcast %92 : vector<64x1xf32> to vector<64x128xf32>
    %94 = arith.subf %90, %93 : vector<64x128xf32>
    %95 = math.exp %94 : vector<64x128xf32>
    %cst_35 = arith.constant dense<0.000000e+00> : vector<64xf32>
    %96 = vector.multi_reduction <add>, %95, %cst_35 [1] : vector<64x128xf32> to vector<64xf32>
    %97 = vector.shape_cast %96 : vector<64xf32> to vector<64x1xf32>
    %98 = vector.broadcast %97 : vector<64x1xf32> to vector<64x128xf32>
    %99 = arith.divf %95, %98 : vector<64x128xf32>
    %c0_36 = arith.constant 0 : index
    %c0_37 = arith.constant 0 : index
    %100 = vector.load %arg6[%c0_36, %c0_37] : memref<64x128xf32, #tpu.memory_space<vmem>>, vector<64x128xf32>
    tpu.vector_store %arg6[%c0_36, %c0_37], %99 {strides = array<i32>} : memref<64x128xf32, #tpu.memory_space<vmem>>, vector<64x128xf32>,
    return
  }
  func.func @transform_0(%arg0: i32) -> (i32, i32) {
    %c0_i32 = arith.constant 0 : i32
    %c0_i32_0 = arith.constant 0 : i32
    return %arg0, %c0_i32 : i32, i32
  }
  func.func @transform_1(%arg0: i32) -> (i32, i32) {
    %c0_i32 = arith.constant 0 : i32
    %c0_i32_0 = arith.constant 0 : i32
    %c0_i32_1 = arith.constant 0 : i32
    return %c0_i32, %c0_i32_0 : i32, i32
  }
  func.func @transform_2(%arg0: i32) -> (i32, i32) {
    %c0_i32 = arith.constant 0 : i32
    %c0_i32_0 = arith.constant 0 : i32
    %c0_i32_1 = arith.constant 0 : i32
    return %c0_i32, %c0_i32_0 : i32, i32
  }
  func.func @transform_3(%arg0: i32) -> (i32, i32) {
    %c0_i32 = arith.constant 0 : i32
    %c0_i32_0 = arith.constant 0 : i32
    %c0_i32_1 = arith.constant 0 : i32
    return %c0_i32, %c0_i32_0 : i32, i32
  }
  func.func @transform_4(%arg0: i32) -> (i32, i32) {
    %c0_i32 = arith.constant 0 : i32
    %c0_i32_0 = arith.constant 0 : i32
    %c0_i32_1 = arith.constant 0 : i32
    return %c0_i32, %c0_i32_0 : i32, i32
  }
  func.func @transform_5(%arg0: i32) -> (i32, i32) {
    %c0_i32 = arith.constant 0 : i32
    %c0_i32_0 = arith.constant 0 : i32
    return %arg0, %c0_i32 : i32, i32
  }
}

</mosaic_0001>

<llo_original>
// kernel: base_recognizer_forward.1
$region0: #{base_recognizer_forward.1}
  #allocation0 [shape = 'u32[]', space=smem, size = 0x4, offset = 0x4, fixed_abs, tag = 'smem constant byte address 0x4 - core index']
  #allocation1 [shape = 'u32[144,128]{1,0:T(1,128)}', space=vmem, size = 0x12000, scoped, tag = 'internal scratch']
  %s0 = inlined_call_operand.vmem [shape: bf16[2048,32], index: 0, kind: input, shape index: {}]
  %s1 = inlined_call_operand.vmem [shape: bf16[32,128], index: 1, kind: input, shape index: {}]
  %s2 = inlined_call_operand.vmem [shape: f32[1,128], index: 2, kind: input, shape index: {}]
  %s3 = inlined_call_operand.vmem [shape: bf16[128,128], index: 3, kind: input, shape index: {}]
  %s4 = inlined_call_operand.vmem [shape: f32[1,128], index: 4, kind: input, shape index: {}]
  %s5 = inlined_call_operand.vmem [shape: f32[128,128], index: 5, kind: output, shape index: {}]
  %s6 = sld [smem:[#allocation0]]
  $region53: #{base_recognizer_forward.1} parent=0
    _
  %s8 = ssub.s32 1, %s6
  %s9 = scalar_select 0, %s8, %s6
  loop: start=0, step=1, limit=4
  $region2: #{base_recognizer_forward.1} parent=0 // loop_pre_header
    _
  $region3: #{base_recognizer_forward.1} parent=0 // loop_header
    %s11 = sphi 0, %s15
    %p12 = scmp.ge.s32.totalorder %s11, 4
    %s21 = sphi 0, %s23
    %s24 = sphi 0, %s21
    %s25 = sphi 0, %s24
    %s41 = sphi 0, %s25
    %s45 = sphi 0, %s45
    %s47 = sphi 0, %s45
    %s48 = sphi 0, %s47
    %s62 = sphi 0, %s48
    %s66 = sphi 0, %s66
    %s68 = sphi 0, %s66
    %s69 = sphi 0, %s68
    %s83 = sphi 0, %s69
    %s87 = sphi 0, %s87
    %s89 = sphi 0, %s87
    %s90 = sphi 0, %s89
    %s104 = sphi 0, %s90
    %s108 = sphi 0, %s108
    %s110 = sphi 0, %s108
    %s111 = sphi 0, %s110
    %s125 = sphi 0, %s111
    %s131 = sphi 0, %s133
    %s134 = sphi 0, %s131
    %s135 = sphi 0, %s134
    %s151 = sphi 0, %s135
  $region4: #{base_recognizer_forward.1} parent=0 // loop_header_branch
    %14 = sbr.rel (%p12) target = $region8
  $region5: #{base_recognizer_forward.1} parent=0 // loop_body
    %s16 = ssub.s32 %s11, 1
    %s17 = ssub.s32 %s11, 2
    %s18 = sadd.s32 %s11, 1
    %s19 = ssub.s32 %s11, %s18
    %p20 = scmp.eq.s32.totalorder %s19, 0
    %s22 = sadd.s32 %s21, 1
    %s23 = scalar_select %p20, %s21, %s22
    %p26 = pneg %p20
    %p27 = scmp.eq.s32.totalorder %s11, 1
    %p28 = por %p26, %p27
    %p29 = scmp.ne.s32.totalorder %s21, %s24
    %p30 = scmp.eq.s32.totalorder %s11, 0
    %p31 = por %p29, %p30
    %p32 = scmp.ne.s32.totalorder %s21, %s24
    %p33 = scmp.eq.s32.totalorder %s16, 1
    %p34 = por %p32, %p33
    %p35 = scmp.ne.s32.totalorder %s24, %s25
    %p36 = scmp.eq.s32.totalorder %s16, 0
    %p37 = por %p35, %p36
    %p38 = scmp.ne.s32.totalorder %s24, %s25
    %p39 = scmp.eq.s32.totalorder %s17, 1
    %p40 = por %p38, %p39
    %p42 = scmp.ne.s32.totalorder %s25, %s41
    %p43 = scmp.eq.s32.totalorder %s17, 0
    %p44 = por %p42, %p43
    %s46 = sadd.s32 %s45, 1
    %p49 = scmp.eq.s32.totalorder %s11, 1
    %p50 = scmp.ne.s32.totalorder %s45, %s47
    %p51 = scmp.eq.s32.totalorder %s11, 0
    %p52 = por %p50, %p51
    %p53 = scmp.ne.s32.totalorder %s45, %s47
    %p54 = scmp.eq.s32.totalorder %s16, 1
    %p55 = por %p53, %p54
    %p56 = scmp.ne.s32.totalorder %s47, %s48
    %p57 = scmp.eq.s32.totalorder %s16, 0
    %p58 = por %p56, %p57
    %p59 = scmp.ne.s32.totalorder %s47, %s48
    %p60 = scmp.eq.s32.totalorder %s17, 1
    %p61 = por %p59, %p60
    %p63 = scmp.ne.s32.totalorder %s48, %s62
    %p64 = scmp.eq.s32.totalorder %s17, 0
    %p65 = por %p63, %p64
    %s67 = sadd.s32 %s66, 1
    %p70 = scmp.eq.s32.totalorder %s11, 1
    %p71 = scmp.ne.s32.totalorder %s66, %s68
    %p72 = scmp.eq.s32.totalorder %s11, 0
    %p73 = por %p71, %p72
    %p74 = scmp.ne.s32.totalorder %s66, %s68
    %p75 = scmp.eq.s32.totalorder %s16, 1
    %p76 = por %p74, %p75
    %p77 = scmp.ne.s32.totalorder %s68, %s69
    %p78 = scmp.eq.s32.totalorder %s16, 0
    %p79 = por %p77, %p78
    %p80 = scmp.ne.s32.totalorder %s68, %s69
    %p81 = scmp.eq.s32.totalorder %s17, 1
    %p82 = por %p80, %p81
    %p84 = scmp.ne.s32.totalorder %s69, %s83
    %p85 = scmp.eq.s32.totalorder %s17, 0
    %p86 = por %p84, %p85
    %s88 = sadd.s32 %s87, 1
    %p91 = scmp.eq.s32.totalorder %s11, 1
    %p92 = scmp.ne.s32.totalorder %s87, %s89
    %p93 = scmp.eq.s32.totalorder %s11, 0
    %p94 = por %p92, %p93
    %p95 = scmp.ne.s32.totalorder %s87, %s89
    %p96 = scmp.eq.s32.totalorder %s16, 1
    %p97 = por %p95, %p96
    %p98 = scmp.ne.s32.totalorder %s89, %s90
    %p99 = scmp.eq.s32.totalorder %s16, 0
    %p100 = por %p98, %p99
    %p101 = scmp.ne.s32.totalorder %s89, %s90
    %p102 = scmp.eq.s32.totalorder %s17, 1
    %p103 = por %p101, %p102
    %p105 = scmp.ne.s32.totalorder %s90, %s104
    %p106 = scmp.eq.s32.totalorder %s17, 0
    %p107 = por %p105, %p106
    %s109 = sadd.s32 %s108, 1
    %p112 = scmp.eq.s32.totalorder %s11, 1
    %p113 = scmp.ne.s32.totalorder %s108, %s110
    %p114 = scmp.eq.s32.totalorder %s11, 0
    %p115 = por %p113, %p114
    %p116 = scmp.ne.s32.totalorder %s108, %s110
    %p117 = scmp.eq.s32.totalorder %s16, 1
    %p118 = por %p116, %p117
    %p119 = scmp.ne.s32.totalorder %s110, %s111
    %p120 = scmp.eq.s32.totalorder %s16, 0
    %p121 = por %p119, %p120
    %p122 = scmp.ne.s32.totalorder %s110, %s111
    %p123 = scmp.eq.s32.totalorder %s17, 1
    %p124 = por %p122, %p123
    %p126 = scmp.ne.s32.totalorder %s111, %s125
    %p127 = scmp.eq.s32.totalorder %s17, 0
    %p128 = por %p126, %p127
    %s129 = ssub.s32 %s11, %s18
    %p130 = scmp.eq.s32.totalorder %s129, 0
    %s132 = sadd.s32 %s131, 1
    %s133 = scalar_select %p130, %s131, %s132
    %p136 = pneg %p130
    %p137 = scmp.eq.s32.totalorder %s11, 1
    %p138 = por %p136, %p137
    %p139 = scmp.ne.s32.totalorder %s131, %s134
    %p140 = scmp.eq.s32.totalorder %s11, 0
    %p141 = por %p139, %p140
    %p142 = scmp.ne.s32.totalorder %s131, %s134
    %p143 = scmp.eq.s32.totalorder %s16, 1
    %p144 = por %p142, %p143
    %p145 = scmp.ne.s32.totalorder %s134, %s135
    %p146 = scmp.eq.s32.totalorder %s16, 0
    %p147 = por %p145, %p146
    %p148 = scmp.ne.s32.totalorder %s134, %s135
    %p149 = scmp.eq.s32.totalorder %s17, 1
    %p150 = por %p148, %p149
    %p152 = scmp.ne.s32.totalorder %s135, %s151
    %p153 = scmp.eq.s32.totalorder %s17, 0
    %p154 = por %p152, %p153
    %p155 = scmp.le.s32.totalorder 1, %s11
    %p156 = scmp.lt.s32.totalorder %s11, 3
    %p157 = pnand %p155, %p156
    %p158 = pneg %p157
    // Predicated region
    $region9: #{base_recognizer_forward.1} parent=5 // pred_check
      _
    $region10: #{base_recognizer_forward.1} parent=5 // pred_check_branch
      %160 = sbr.rel (%p157) target = $region12
    $region11: #{base_recognizer_forward.1} parent=5 // pred_region
      %s161 = ssub.s32 %s11, 1
      // Predicated region
      $region13: #{base_recognizer_forward.1} parent=11 // pred_check
        %p162 = pneg %p58
      $region14: #{base_recognizer_forward.1} parent=11 // pred_check_branch
        %164 = sbr.rel (%p162) target = $region16
      $region15: #{base_recognizer_forward.1} parent=11 // pred_region
        _
      $region16: #{base_recognizer_forward.1} parent=11 // pred_fallthru
        _
      // Predicated region
      $region17: #{base_recognizer_forward.1} parent=11 // pred_check
        %p165 = pneg %p79
      $region18: #{base_recognizer_forward.1} parent=11 // pred_check_branch
        %167 = sbr.rel (%p165) target = $region20
      $region19: #{base_recognizer_forward.1} parent=11 // pred_region
        _
      $region20: #{base_recognizer_forward.1} parent=11 // pred_fallthru
        _
      // Predicated region
      $region21: #{base_recognizer_forward.1} parent=11 // pred_check
        %p168 = pneg %p100
      $region22: #{base_recognizer_forward.1} parent=11 // pred_check_branch
        %170 = sbr.rel (%p168) target = $region24
      $region23: #{base_recognizer_forward.1} parent=11 // pred_region
        _
      $region24: #{base_recognizer_forward.1} parent=11 // pred_fallthru
        _
      // Predicated region
      $region25: #{base_recognizer_forward.1} parent=11 // pred_check
        %p171 = pneg %p121
      $region26: #{base_recognizer_forward.1} parent=11 // pred_check_branch
        %173 = sbr.rel (%p171) target = $region28
      $region27: #{base_recognizer_forward.1} parent=11 // pred_region
        _
      $region28: #{base_recognizer_forward.1} parent=11 // pred_fallthru
        _
    $region12: #{base_recognizer_forward.1} parent=5 // pred_fallthru
      _
    %p174 = scmp.lt.s32.totalorder %s11, 2
    // Predicated region
    $region29: #{base_recognizer_forward.1} parent=5 // pred_check
      %p175 = pneg %p174
    $region30: #{base_recognizer_forward.1} parent=5 // pred_check_branch
      %177 = sbr.rel (%p175) target = $region32
    $region31: #{base_recognizer_forward.1} parent=5 // pred_region
      // Predicated region
      $region33: #{base_recognizer_forward.1} parent=31 // pred_check
        %p178 = pneg %p31
      $region34: #{base_recognizer_forward.1} parent=31 // pred_check_branch
        %180 = sbr.rel (%p178) target = $region36
      $region35: #{base_recognizer_forward.1} parent=31 // pred_region
        %s181 = smul.u32 128, %s11
        %p182 = scmp.lt.s32.totalorder %s181, 255
        %s183 = scalar_select %p182, %s181, 255
        %s184 = smul.addr %s183, 4
        %s185 = scalar_lea.vmem %s0, %s184
        %s186 = smul.u32 128, %s11
      $region36: #{base_recognizer_forward.1} parent=31 // pred_fallthru
        _
    $region32: #{base_recognizer_forward.1} parent=5 // pred_fallthru
      _
    %p187 = scmp.le.s32.totalorder 1, %s11
    %p188 = scmp.lt.s32.totalorder %s11, 3
    %p189 = pnand %p187, %p188
    %p190 = pneg %p189
    // Predicated region
    $region37: #{base_recognizer_forward.1} parent=5 // pred_check
      _
    $region38: #{base_recognizer_forward.1} parent=5 // pred_check_branch
      %192 = sbr.rel (%p189) target = $region40
    $region39: #{base_recognizer_forward.1} parent=5 // pred_region
      %s193 = ssub.s32 %s11, 1
      %s194 = smul.u32 128, %s16
      %p195 = scmp.lt.s32.totalorder %s194, 255
      %s196 = scalar_select %p195, %s194, 255
      %s197 = smul.addr %s196, 4
      %s198 = scalar_lea.vmem %s0, %s197
      %p199 = pneg %p37
      %p200 = pneg %p34
      %p201 = pneg %p58
      %p202 = pneg %p55
      %p203 = pneg %p79
      %p204 = pneg %p76
      %p205 = pneg %p100
      %p206 = pneg %p97
      %p207 = pneg %p121
      %p208 = pneg %p118
      %p209 = pneg %p147
      %p210 = pneg %p144
      %s211 = smul.u32 8, %s16
      %p212 = scmp.lt.s32.totalorder %s211, 15
      %s213 = scalar_select %p212, %s211, 15
      %s214 = smul.addr %s213, 8
      %s215 = scalar_lea.vmem %s5, %s214
      %s216 = smul.u32 128, %s16
      %p217 = scmp.lt.s32.totalorder %s216, 255
      %s218 = scalar_select %p217, %s216, 255
      %s219 = smul.addr %s218, 4
      %s220 = scalar_lea.vmem %s0, %s219
      %s221 = smul.u32 128, %s16
      %s222 = smul.u32 8, %s16
      %p223 = scmp.lt.s32.totalorder %s222, 15
      %s224 = scalar_select %p223, %s222, 15
      %s225 = smul.addr %s224, 8
      %s226 = scalar_lea.vmem %s5, %s225
      %s227 = smul.u32 8, %s16
      %v229 = vld [vmem:[%s1] sm:$0xf]
      %v230 = vld [vmem:[%s1 + $0x4] sm:$0xf]
      %v231 = vld [vmem:[%s1 + $0x8] sm:$0xf]
      %v232 = vld [vmem:[%s1 + $0xc] sm:$0xf]
      %v233 = vld [vmem:[%s2] sm:$0x1]
      %v234 = vld [vmem:[%s3] sm:$0xf]
      %v235 = vld [vmem:[%s3 + $0x4] sm:$0xf]
      %v236 = vld [vmem:[%s3 + $0x8] sm:$0xf]
      %v237 = vld [vmem:[%s3 + $0xc] sm:$0xf]
      %v238 = vld [vmem:[%s3 + $0x10] sm:$0xf]
      %v239 = vld [vmem:[%s3 + $0x14] sm:$0xf]
      %v240 = vld [vmem:[%s3 + $0x18] sm:$0xf]
      %v241 = vld [vmem:[%s3 + $0x1c] sm:$0xf]
      %v242 = vld [vmem:[%s3 + $0x20] sm:$0xf]
      %v243 = vld [vmem:[%s3 + $0x24] sm:$0xf]
      %v244 = vld [vmem:[%s3 + $0x28] sm:$0xf]
      %v245 = vld [vmem:[%s3 + $0x2c] sm:$0xf]
      %v246 = vld [vmem:[%s3 + $0x30] sm:$0xf]
      %v247 = vld [vmem:[%s3 + $0x34] sm:$0xf]
      %v248 = vld [vmem:[%s3 + $0x38] sm:$0xf]
      %v249 = vld [vmem:[%s3 + $0x3c] sm:$0xf]
      %v250 = vld [vmem:[%s4] sm:$0x1]
      %v251 = vld [vmem:[%s220] sm:$0xf]
      %v252 = vld [vmem:[%s220 + $0x4] sm:$0xf]
      %v253 = vld [vmem:[%s220 + $0x8] sm:$0xf]
      %v254 = vld [vmem:[%s220 + $0xc] sm:$0xf]
      %v255 = vld [vmem:[%s220 + $0x10] sm:$0xf]
      %v256 = vld [vmem:[%s220 + $0x14] sm:$0xf]
      %v257 = vld [vmem:[%s220 + $0x18] sm:$0xf]
      %v258 = vld [vmem:[%s220 + $0x1c] sm:$0xf]
      %v259 = vld [vmem:[%s220 + $0x20] sm:$0xf]
      %v260 = vld [vmem:[%s220 + $0x24] sm:$0xf]
      %v261 = vld [vmem:[%s220 + $0x28] sm:$0xf]
      %v262 = vld [vmem:[%s220 + $0x2c] sm:$0xf]
      %v263 = vld [vmem:[%s220 + $0x30] sm:$0xf]
      %v264 = vld [vmem:[%s220 + $0x34] sm:$0xf]
      %v265 = vld [vmem:[%s220 + $0x38] sm:$0xf]
      %v266 = vld [vmem:[%s220 + $0x3c] sm:$0xf]
      %v268 = vlaneseq
      %v269 = vshrl.u32 %v268, 7
      %v270 = vsub.s32 0, %v269
      %v271 = vrot.slane %v233, %v270
      %v289 = vunpack.c.l.b16 %v251
      %v290 = vunpack.c.l.b16 %v252
      %v291 = vunpack.c.l.b16 %v253
      %v292 = vunpack.c.l.b16 %v254
      %v293 = vunpack.c.l.b16 %v255
      %v294 = vunpack.c.l.b16 %v256
      %v295 = vunpack.c.l.b16 %v257
      %v296 = vunpack.c.l.b16 %v258
      %v297 = vunpack.c.l.b16 %v259
      %v298 = vunpack.c.l.b16 %v260
      %v299 = vunpack.c.l.b16 %v261
      %v300 = vunpack.c.l.b16 %v262
      %v301 = vunpack.c.l.b16 %v263
      %v302 = vunpack.c.l.b16 %v264
      %v303 = vunpack.c.l.b16 %v265
      %v304 = vunpack.c.l.b16 %v266
      %v305 = vpack.c.b16 %v290, %v289
      %v306 = vpack.c.b16 %v292, %v291
      %v307 = vpack.c.b16 %v294, %v293
      %v308 = vpack.c.b16 %v296, %v295
      %v309 = vpack.c.b16 %v298, %v297
      %v310 = vpack.c.b16 %v300, %v299
      %v311 = vpack.c.b16 %v302, %v301
      %v312 = vpack.c.b16 %v304, %v303
      %v317 = vunpack.c.l.b16 %v229
      %v318 = vunpack.c.l.b16 %v230
      %v319 = vunpack.c.l.b16 %v231
      %v320 = vunpack.c.l.b16 %v232
      %v321 = vpack.c.b16 %v318, %v317
      %v322 = vpack.c.b16 %v320, %v319
      %vm325 = vcmask 261120
      %v327 = vsel %vm325, %v305, 0
      %v330 = vsel %vm325, %v306, 0
      %v333 = vsel %vm325, %v307, 0
      %v336 = vsel %vm325, %v308, 0
      %v339 = vsel %vm325, %v309, 0
      %v342 = vsel %vm325, %v310, 0
      %v345 = vsel %vm325, %v311, 0
      %v348 = vsel %vm325, %v312, 0
      %350 = vmatprep.subr.bf16.mxu0 0
      %351 = vmatpush1.bf16.msra.mxu0 %v321
      %352 = vmatprep.subr.bf16.mxu0 0
      %353 = vmatpush1.bf16.msra.mxu0 %v322
      %354 = vmatprep.subr.bf16.mxu0 0
      %355 = vmatpush1.bf16.msra.mxu0 0
      %356 = vmatprep.subr.bf16.mxu0 0
      %357 = vmatpush1.bf16.msra.mxu0 0
      %358 = vmatprep.subr.bf16.mxu0 0
      %359 = vmatpush1.bf16.msra.mxu0 0
      %360 = vmatprep.subr.bf16.mxu0 0
      %361 = vmatpush1.bf16.msra.mxu0 0
      %362 = vmatprep.subr.bf16.mxu0 0
      %363 = vmatpush1.bf16.msra.mxu0 0
      %364 = vmatprep.subr.bf16.mxu0 0
      %365 = vmatpush1.bf16.msra.mxu0 0
      %366 = vmatprep.subr.bf16.mxu0 0
      %367 = vmatpush1.bf16.msra.mxu0 0
      %368 = vmatprep.subr.bf16.mxu0 0
      %369 = vmatpush1.bf16.msra.mxu0 0
      %370 = vmatprep.subr.bf16.mxu0 0
      %371 = vmatpush1.bf16.msra.mxu0 0
      %372 = vmatprep.subr.bf16.mxu0 0
      %373 = vmatpush1.bf16.msra.mxu0 0
      %374 = vmatprep.subr.bf16.mxu0 0
      %375 = vmatpush1.bf16.msra.mxu0 0
      %376 = vmatprep.subr.bf16.mxu0 0
      %377 = vmatpush1.bf16.msra.mxu0 0
      %378 = vmatprep.subr.bf16.mxu0 0
      %379 = vmatpush1.bf16.msra.mxu0 0
      %380 = vmatprep.subr.bf16.mxu0 0
      %381 = vmatpush1.bf16.msra.mxu0 0
      %382 = vmatprep.mubr.bf16.mxu0 0
      %383 = vmatmul.mubr.bf16.gmra.mrb[0].mxu0 %v327
      %v384 = vpop.f32.mrb[0].mxu0
      %v385 = vadd.f32 %v271, %v384
      %v386 = vpop.f32.mrb[0].mxu0
      %v387 = vpop.f32.mrb[0].mxu0
      %v388 = vadd.f32 %v271, %v387
      %v389 = vpop.f32.mrb[0].mxu0
      %390 = vmatprep.mubr.bf16.mxu0 0
      %391 = vmatmul.mubr.bf16.gmra.mrb[0].mxu0 %v330
      %v392 = vpop.f32.mrb[0].mxu0
      %v393 = vadd.f32 %v271, %v392
      %v394 = vpop.f32.mrb[0].mxu0
      %v395 = vpop.f32.mrb[0].mxu0
      %v396 = vadd.f32 %v271, %v395
      %v397 = vpop.f32.mrb[0].mxu0
      %398 = vmatprep.mubr.bf16.mxu0 0
      %399 = vmatmul.mubr.bf16.gmra.mrb[0].mxu0 %v333
      %v400 = vpop.f32.mrb[0].mxu0
      %v401 = vadd.f32 %v271, %v400
      %v402 = vpop.f32.mrb[0].mxu0
      %v403 = vpop.f32.mrb[0].mxu0
      %v404 = vadd.f32 %v271, %v403
      %v405 = vpop.f32.mrb[0].mxu0
      %406 = vmatprep.mubr.bf16.mxu0 0
      %407 = vmatmul.mubr.bf16.gmra.mrb[0].mxu0 %v336
      %v408 = vpop.f32.mrb[0].mxu0
      %v409 = vadd.f32 %v271, %v408
      %v410 = vpop.f32.mrb[0].mxu0
      %v411 = vpop.f32.mrb[0].mxu0
      %v412 = vadd.f32 %v271, %v411
      %v413 = vpop.f32.mrb[0].mxu0
      %414 = vmatprep.mubr.bf16.mxu0 0
      %415 = vmatmul.mubr.bf16.gmra.mrb[0].mxu0 %v339
      %v416 = vpop.f32.mrb[0].mxu0
      %v417 = vadd.f32 %v271, %v416
      %v418 = vpop.f32.mrb[0].mxu0
      %v419 = vpop.f32.mrb[0].mxu0
      %v420 = vadd.f32 %v271, %v419
      %v421 = vpop.f32.mrb[0].mxu0
      %422 = vmatprep.mubr.bf16.mxu0 0
      %423 = vmatmul.mubr.bf16.gmra.mrb[0].mxu0 %v342
      %v424 = vpop.f32.mrb[0].mxu0
      %v425 = vadd.f32 %v271, %v424
      %v426 = vpop.f32.mrb[0].mxu0
      %v427 = vpop.f32.mrb[0].mxu0
      %v428 = vadd.f32 %v271, %v427
      %v429 = vpop.f32.mrb[0].mxu0
      %430 = vmatprep.mubr.bf16.mxu0 0
      %431 = vmatmul.mubr.bf16.gmra.mrb[0].mxu0 %v345
      %v432 = vpop.f32.mrb[0].mxu0
      %v433 = vadd.f32 %v271, %v432
      %v434 = vpop.f32.mrb[0].mxu0
      %v435 = vpop.f32.mrb[0].mxu0
      %v436 = vadd.f32 %v271, %v435
      %v437 = vpop.f32.mrb[0].mxu0
      %438 = vmatprep.mubr.bf16.mxu0 0
      %439 = vmatmul.mubr.bf16.gmra.mrb[0].mxu0 %v348
      %v440 = vpop.f32.mrb[0].mxu0
      %v441 = vadd.f32 %v271, %v440
      %v442 = vpop.f32.mrb[0].mxu0
      %v443 = vpop.f32.mrb[0].mxu0
      %v444 = vadd.f32 %v271, %v443
      %v445 = vpop.f32.mrb[0].mxu0
      %446 = vdwg.mxu0
      %v447 = vmax.f32 %v385, 0.0
      %v448 = vmax.f32 %v388, 0.0
      %v449 = vmax.f32 %v393, 0.0
      %v450 = vmax.f32 %v396, 0.0
      %v451 = vmax.f32 %v401, 0.0
      %v452 = vmax.f32 %v404, 0.0
      %v453 = vmax.f32 %v409, 0.0
      %v454 = vmax.f32 %v412, 0.0
      %v455 = vmax.f32 %v417, 0.0
      %v456 = vmax.f32 %v420, 0.0
      %v457 = vmax.f32 %v425, 0.0
      %v458 = vmax.f32 %v428, 0.0
      %v459 = vmax.f32 %v433, 0.0
      %v460 = vmax.f32 %v436, 0.0
      %v461 = vmax.f32 %v441, 0.0
      %v462 = vmax.f32 %v444, 0.0
      %v463 = vadd.f32 %v447, 0.0
      %v464 = vadd.f32 %v448, 0.0
      %v465 = vadd.f32 %v449, 0.0
      %v466 = vadd.f32 %v450, 0.0
      %v467 = vadd.f32 %v451, 0.0
      %v468 = vadd.f32 %v452, 0.0
      %v469 = vadd.f32 %v453, 0.0
      %v470 = vadd.f32 %v454, 0.0
      %v471 = vadd.f32 %v463, %v455
      %v472 = vadd.f32 %v464, %v456
      %v473 = vadd.f32 %v465, %v457
      %v474 = vadd.f32 %v466, %v458
      %v475 = vadd.f32 %v467, %v459
      %v476 = vadd.f32 %v468, %v460
      %v477 = vadd.f32 %v469, %v461
      %v478 = vadd.f32 %v470, %v462
      %v479 = vld [vmem:[%s220 + $0x40] sm:$0xf]
      %v480 = vld [vmem:[%s220 + $0x44] sm:$0xf]
      %v481 = vld [vmem:[%s220 + $0x48] sm:$0xf]
      %v482 = vld [vmem:[%s220 + $0x4c] sm:$0xf]
      %v483 = vld [vmem:[%s220 + $0x50] sm:$0xf]
      %v484 = vld [vmem:[%s220 + $0x54] sm:$0xf]
      %v485 = vld [vmem:[%s220 + $0x58] sm:$0xf]
      %v486 = vld [vmem:[%s220 + $0x5c] sm:$0xf]
      %v487 = vld [vmem:[%s220 + $0x60] sm:$0xf]
      %v488 = vld [vmem:[%s220 + $0x64] sm:$0xf]
      %v489 = vld [vmem:[%s220 + $0x68] sm:$0xf]
      %v490 = vld [vmem:[%s220 + $0x6c] sm:$0xf]
      %v491 = vld [vmem:[%s220 + $0x70] sm:$0xf]
      %v492 = vld [vmem:[%s220 + $0x74] sm:$0xf]
      %v493 = vld [vmem:[%s220 + $0x78] sm:$0xf]
      %v494 = vld [vmem:[%s220 + $0x7c] sm:$0xf]
      %v511 = vunpack.c.l.b16 %v479
      %v512 = vunpack.c.l.b16 %v480
      %v513 = vunpack.c.l.b16 %v481
      %v514 = vunpack.c.l.b16 %v482
      %v515 = vunpack.c.l.b16 %v483
      %v516 = vunpack.c.l.b16 %v484
      %v517 = vunpack.c.l.b16 %v485
      %v518 = vunpack.c.l.b16 %v486
      %v519 = vunpack.c.l.b16 %v487
      %v520 = vunpack.c.l.b16 %v488
      %v521 = vunpack.c.l.b16 %v489
      %v522 = vunpack.c.l.b16 %v490
      %v523 = vunpack.c.l.b16 %v491
      %v524 = vunpack.c.l.b16 %v492
      %v525 = vunpack.c.l.b16 %v493
      %v526 = vunpack.c.l.b16 %v494
      %v527 = vpack.c.b16 %v512, %v511
      %v528 = vpack.c.b16 %v514, %v513
      %v529 = vpack.c.b16 %v516, %v515
      %v530 = vpack.c.b16 %v518, %v517
      %v531 = vpack.c.b16 %v520, %v519
      %v532 = vpack.c.b16 %v522, %v521
      %v533 = vpack.c.b16 %v524, %v523
      %v534 = vpack.c.b16 %v526, %v525
      %v536 = vsel %vm325, %v527, 0
      %v539 = vsel %vm325, %v528, 0
      %v542 = vsel %vm325, %v529, 0
      %v545 = vsel %vm325, %v530, 0
      %v548 = vsel %vm325, %v531, 0
      %v551 = vsel %vm325, %v532, 0
      %v554 = vsel %vm325, %v533, 0
      %v557 = vsel %vm325, %v534, 0
      %559 = vmatprep.subr.bf16.mxu0 0
      %560 = vmatpush1.bf16.msra.mxu0 %v321
      %561 = vmatprep.subr.bf16.mxu0 0
      %562 = vmatpush1.bf16.msra.mxu0 %v322
      %563 = vmatprep.subr.bf16.mxu0 0
      %564 = vmatpush1.bf16.msra.mxu0 0
      %565 = vmatprep.subr.bf16.mxu0 0
      %566 = vmatpush1.bf16.msra.mxu0 0
      %567 = vmatprep.subr.bf16.mxu0 0
      %568 = vmatpush1.bf16.msra.mxu0 0
      %569 = vmatprep.subr.bf16.mxu0 0
      %570 = vmatpush1.bf16.msra.mxu0 0
      %571 = vmatprep.subr.bf16.mxu0 0
      %572 = vmatpush1.bf16.msra.mxu0 0
      %573 = vmatprep.subr.bf16.mxu0 0
      %574 = vmatpush1.bf16.msra.mxu0 0
      %575 = vmatprep.subr.bf16.mxu0 0
      %576 = vmatpush1.bf16.msra.mxu0 0
      %577 = vmatprep.subr.bf16.mxu0 0
      %578 = vmatpush1.bf16.msra.mxu0 0
      %579 = vmatprep.subr.bf16.mxu0 0
      %580 = vmatpush1.bf16.msra.mxu0 0
      %581 = vmatprep.subr.bf16.mxu0 0
      %582 = vmatpush1.bf16.msra.mxu0 0
      %583 = vmatprep.subr.bf16.mxu0 0
      %584 = vmatpush1.bf16.msra.mxu0 0
      %585 = vmatprep.subr.bf16.mxu0 0
      %586 = vmatpush1.bf16.msra.mxu0 0
      %587 = vmatprep.subr.bf16.mxu0 0
      %588 = vmatpush1.bf16.msra.mxu0 0
      %589 = vmatprep.subr.bf16.mxu0 0
      %590 = vmatpush1.bf16.msra.mxu0 0
      %591 = vmatprep.mubr.bf16.mxu0 0
      %592 = vmatmul.mubr.bf16.gmra.mrb[0].mxu0 %v536
      %v593 = vpop.f32.mrb[0].mxu0
      %v594 = vadd.f32 %v271, %v593
      %v595 = vpop.f32.mrb[0].mxu0
      %v596 = vpop.f32.mrb[0].mxu0
      %v597 = vadd.f32 %v271, %v596
      %v598 = vpop.f32.mrb[0].mxu0
      %599 = vmatprep.mubr.bf16.mxu0 0
      %600 = vmatmul.mubr.bf16.gmra.mrb[0].mxu0 %v539
      %v601 = vpop.f32.mrb[0].mxu0
      %v602 = vadd.f32 %v271, %v601
      %v603 = vpop.f32.mrb[0].mxu0
      %v604 = vpop.f32.mrb[0].mxu0
      %v605 = vadd.f32 %v271, %v604
      %v606 = vpop.f32.mrb[0].mxu0
      %607 = vmatprep.mubr.bf16.mxu0 0
      %608 = vmatmul.mubr.bf16.gmra.mrb[0].mxu0 %v542
      %v609 = vpop.f32.mrb[0].mxu0
      %v610 = vadd.f32 %v271, %v609
      %v611 = vpop.f32.mrb[0].mxu0
      %v612 = vpop.f32.mrb[0].mxu0
      %v613 = vadd.f32 %v271, %v612
      %v614 = vpop.f32.mrb[0].mxu0
      %615 = vmatprep.mubr.bf16.mxu0 0
      %616 = vmatmul.mubr.bf16.gmra.mrb[0].mxu0 %v545
      %v617 = vpop.f32.mrb[0].mxu0
      %v618 = vadd.f32 %v271, %v617
      %v619 = vpop.f32.mrb[0].mxu0
      %v620 = vpop.f32.mrb[0].mxu0
      %v621 = vadd.f32 %v271, %v620
      %v622 = vpop.f32.mrb[0].mxu0
      %623 = vmatprep.mubr.bf16.mxu0 0
      %624 = vmatmul.mubr.bf16.gmra.mrb[0].mxu0 %v548
      %v625 = vpop.f32.mrb[0].mxu0
      %v626 = vadd.f32 %v271, %v625
      %v627 = vpop.f32.mrb[0].mxu0
      %v628 = vpop.f32.mrb[0].mxu0
      %v629 = vadd.f32 %v271, %v628
      %v630 = vpop.f32.mrb[0].mxu0
      %631 = vmatprep.mubr.bf16.mxu0 0
      %632 = vmatmul.mubr.bf16.gmra.mrb[0].mxu0 %v551
      %v633 = vpop.f32.mrb[0].mxu0
      %v634 = vadd.f32 %v271, %v633
      %v635 = vpop.f32.mrb[0].mxu0
      %v636 = vpop.f32.mrb[0].mxu0
      %v637 = vadd.f32 %v271, %v636
      %v638 = vpop.f32.mrb[0].mxu0
      %639 = vmatprep.mubr.bf16.mxu0 0
      %640 = vmatmul.mubr.bf16.gmra.mrb[0].mxu0 %v554
      %v641 = vpop.f32.mrb[0].mxu0
      %v642 = vadd.f32 %v271, %v641
      %v643 = vpop.f32.mrb[0].mxu0
      %v644 = vpop.f32.mrb[0].mxu0
      %v645 = vadd.f32 %v271, %v644
      %v646 = vpop.f32.mrb[0].mxu0
      %647 = vmatprep.mubr.bf16.mxu0 0
      %648 = vmatmul.mubr.bf16.gmra.mrb[0].mxu0 %v557
      %v649 = vpop.f32.mrb[0].mxu0
      %v650 = vadd.f32 %v271, %v649
      %v651 = vpop.f32.mrb[0].mxu0
      %v652 = vpop.f32.mrb[0].mxu0
      %v653 = vadd.f32 %v271, %v652
      %v654 = vpop.f32.mrb[0].mxu0
      %655 = vdwg.mxu0
      %v656 = vmax.f32 %v594, 0.0
      %v657 = vmax.f32 %v597, 0.0
      %v658 = vmax.f32 %v602, 0.0
      %v659 = vmax.f32 %v605, 0.0
      %v660 = vmax.f32 %v610, 0.0
      %v661 = vmax.f32 %v613, 0.0
      %v662 = vmax.f32 %v618, 0.0
      %v663 = vmax.f32 %v621, 0.0
      %v664 = vmax.f32 %v626, 0.0
      %v665 = vmax.f32 %v629, 0.0
      %v666 = vmax.f32 %v634, 0.0
      %v667 = vmax.f32 %v637, 0.0
      %v668 = vmax.f32 %v642, 0.0
      %v669 = vmax.f32 %v645, 0.0
      %v670 = vmax.f32 %v650, 0.0
      %v671 = vmax.f32 %v653, 0.0
      %v672 = vadd.f32 %v471, %v656
      %v673 = vadd.f32 %v472, %v657
      %v674 = vadd.f32 %v473, %v658
      %v675 = vadd.f32 %v474, %v659
      %v676 = vadd.f32 %v475, %v660
      %v677 = vadd.f32 %v476, %v661
      %v678 = vadd.f32 %v477, %v662
      %v679 = vadd.f32 %v478, %v663
      %v680 = vadd.f32 %v672, %v664
      %v681 = vadd.f32 %v673, %v665
      %v682 = vadd.f32 %v674, %v666
      %v683 = vadd.f32 %v675, %v667
      %v684 = vadd.f32 %v676, %v668
      %v685 = vadd.f32 %v677, %v669
      %v686 = vadd.f32 %v678, %v670
      %v687 = vadd.f32 %v679, %v671
      %v688 = vld [vmem:[%s220 + $0x80] sm:$0xf]
      %v689 = vld [vmem:[%s220 + $0x84] sm:$0xf]
      %v690 = vld [vmem:[%s220 + $0x88] sm:$0xf]
      %v691 = vld [vmem:[%s220 + $0x8c] sm:$0xf]
      %v692 = vld [vmem:[%s220 + $0x90] sm:$0xf]
      %v693 = vld [vmem:[%s220 + $0x94] sm:$0xf]
      %v694 = vld [vmem:[%s220 + $0x98] sm:$0xf]
      %v695 = vld [vmem:[%s220 + $0x9c] sm:$0xf]
      %v696 = vld [vmem:[%s220 + $0xa0] sm:$0xf]
      %v697 = vld [vmem:[%s220 + $0xa4] sm:$0xf]
      %v698 = vld [vmem:[%s220 + $0xa8] sm:$0xf]
      %v699 = vld [vmem:[%s220 + $0xac] sm:$0xf]
      %v700 = vld [vmem:[%s220 + $0xb0] sm:$0xf]
      %v701 = vld [vmem:[%s220 + $0xb4] sm:$0xf]
      %v702 = vld [vmem:[%s220 + $0xb8] sm:$0xf]
      %v703 = vld [vmem:[%s220 + $0xbc] sm:$0xf]
      %v720 = vunpack.c.l.b16 %v688
      %v721 = vunpack.c.l.b16 %v689
      %v722 = vunpack.c.l.b16 %v690
      %v723 = vunpack.c.l.b16 %v691
      %v724 = vunpack.c.l.b16 %v692
      %v725 = vunpack.c.l.b16 %v693
      %v726 = vunpack.c.l.b16 %v694
      %v727 = vunpack.c.l.b16 %v695
      %v728 = vunpack.c.l.b16 %v696
      %v729 = vunpack.c.l.b16 %v697
      %v730 = vunpack.c.l.b16 %v698
      %v731 = vunpack.c.l.b16 %v699
      %v732 = vunpack.c.l.b16 %v700
      %v733 = vunpack.c.l.b16 %v701
      %v734 = vunpack.c.l.b16 %v702
      %v735 = vunpack.c.l.b16 %v703
      %v736 = vpack.c.b16 %v721, %v720
      %v737 = vpack.c.b16 %v723, %v722
      %v738 = vpack.c.b16 %v725, %v724
      %v739 = vpack.c.b16 %v727, %v726
      %v740 = vpack.c.b16 %v729, %v728
      %v741 = vpack.c.b16 %v731, %v730
      %v742 = vpack.c.b16 %v733, %v732
      %v743 = vpack.c.b16 %v735, %v734
      %v745 = vsel %vm325, %v736, 0
      %v748 = vsel %vm325, %v737, 0
      %v751 = vsel %vm325, %v738, 0
      %v754 = vsel %vm325, %v739, 0
      %v757 = vsel %vm325, %v740, 0
      %v760 = vsel %vm325, %v741, 0
      %v763 = vsel %vm325, %v742, 0
      %v766 = vsel %vm325, %v743, 0
      %768 = vmatprep.subr.bf16.mxu0 0
      %769 = vmatpush1.bf16.msra.mxu0 %v321
      %770 = vmatprep.subr.bf16.mxu0 0
      %771 = vmatpush1.bf16.msra.mxu0 %v322
      %772 = vmatprep.subr.bf16.mxu0 0
      %773 = vmatpush1.bf16.msra.mxu0 0
      %774 = vmatprep.subr.bf16.mxu0 0
      %775 = vmatpush1.bf16.msra.mxu0 0
      %776 = vmatprep.subr.bf16.mxu0 0
      %777 = vmatpush1.bf16.msra.mxu0 0
      %778 = vmatprep.subr.bf16.mxu0 0
      %779 = vmatpush1.bf16.msra.mxu0 0
      %780 = vmatprep.subr.bf16.mxu0 0
      %781 = vmatpush1.bf16.msra.mxu0 0
      %782 = vmatprep.subr.bf16.mxu0 0
      %783 = vmatpush1.bf16.msra.mxu0 0
      %784 = vmatprep.subr.bf16.mxu0 0
      %785 = vmatpush1.bf16.msra.mxu0 0
      %786 = vmatprep.subr.bf16.mxu0 0
      %787 = vmatpush1.bf16.msra.mxu0 0
      %788 = vmatprep.subr.bf16.mxu0 0
      %789 = vmatpush1.bf16.msra.mxu0 0
      %790 = vmatprep.subr.bf16.mxu0 0
      %791 = vmatpush1.bf16.msra.mxu0 0
      %792 = vmatprep.subr.bf16.mxu0 0
      %793 = vmatpush1.bf16.msra.mxu0 0
      %794 = vmatprep.subr.bf16.mxu0 0
      %795 = vmatpush1.bf16.msra.mxu0 0
      %796 = vmatprep.subr.bf16.mxu0 0
      %797 = vmatpush1.bf16.msra.mxu0 0
      %798 = vmatprep.subr.bf16.mxu0 0
      %799 = vmatpush1.bf16.msra.mxu0 0
      %800 = vmatprep.mubr.bf16.mxu0 0
      %801 = vmatmul.mubr.bf16.gmra.mrb[0].mxu0 %v745
      %v802 = vpop.f32.mrb[0].mxu0
      %v803 = vadd.f32 %v271, %v802
      %v804 = vpop.f32.mrb[0].mxu0
      %v805 = vpop.f32.mrb[0].mxu0
      %v806 = vadd.f32 %v271, %v805
      %v807 = vpop.f32.mrb[0].mxu0
      %808 = vmatprep.mubr.bf16.mxu0 0
      %809 = vmatmul.mubr.bf16.gmra.mrb[0].mxu0 %v748
      %v810 = vpop.f32.mrb[0].mxu0
      %v811 = vadd.f32 %v271, %v810
      %v812 = vpop.f32.mrb[0].mxu0
      %v813 = vpop.f32.mrb[0].mxu0
      %v814 = vadd.f32 %v271, %v813
      %v815 = vpop.f32.mrb[0].mxu0
      %816 = vmatprep.mubr.bf16.mxu0 0
      %817 = vmatmul.mubr.bf16.gmra.mrb[0].mxu0 %v751
      %v818 = vpop.f32.mrb[0].mxu0
      %v819 = vadd.f32 %v271, %v818
      %v820 = vpop.f32.mrb[0].mxu0
      %v821 = vpop.f32.mrb[0].mxu0
      %v822 = vadd.f32 %v271, %v821
      %v823 = vpop.f32.mrb[0].mxu0
      %824 = vmatprep.mubr.bf16.mxu0 0
      %825 = vmatmul.mubr.bf16.gmra.mrb[0].mxu0 %v754
      %v826 = vpop.f32.mrb[0].mxu0
      %v827 = vadd.f32 %v271, %v826
      %v828 = vpop.f32.mrb[0].mxu0
      %v829 = vpop.f32.mrb[0].mxu0
      %v830 = vadd.f32 %v271, %v829
      %v831 = vpop.f32.mrb[0].mxu0
      %832 = vmatprep.mubr.bf16.mxu0 0
      %833 = vmatmul.mubr.bf16.gmra.mrb[0].mxu0 %v757
      %v834 = vpop.f32.mrb[0].mxu0
      %v835 = vadd.f32 %v271, %v834
      %v836 = vpop.f32.mrb[0].mxu0
      %v837 = vpop.f32.mrb[0].mxu0
      %v838 = vadd.f32 %v271, %v837
      %v839 = vpop.f32.mrb[0].mxu0
      %840 = vmatprep.mubr.bf16.mxu0 0
      %841 = vmatmul.mubr.bf16.gmra.mrb[0].mxu0 %v760
      %v842 = vpop.f32.mrb[0].mxu0
      %v843 = vadd.f32 %v271, %v842
      %v844 = vpop.f32.mrb[0].mxu0
      %v845 = vpop.f32.mrb[0].mxu0
      %v846 = vadd.f32 %v271, %v845
      %v847 = vpop.f32.mrb[0].mxu0
      %848 = vmatprep.mubr.bf16.mxu0 0
      %849 = vmatmul.mubr.bf16.gmra.mrb[0].mxu0 %v763
      %v850 = vpop.f32.mrb[0].mxu0
      %v851 = vadd.f32 %v271, %v850
      %v852 = vpop.f32.mrb[0].mxu0
      %v853 = vpop.f32.mrb[0].mxu0
      %v854 = vadd.f32 %v271, %v853
      %v855 = vpop.f32.mrb[0].mxu0
      %856 = vmatprep.mubr.bf16.mxu0 0
      %857 = vmatmul.mubr.bf16.gmra.mrb[0].mxu0 %v766
      %v858 = vpop.f32.mrb[0].mxu0
      %v859 = vadd.f32 %v271, %v858
      %v860 = vpop.f32.mrb[0].mxu0
      %v861 = vpop.f32.mrb[0].mxu0
      %v862 = vadd.f32 %v271, %v861
      %v863 = vpop.f32.mrb[0].mxu0
      %864 = vdwg.mxu0
      %v865 = vmax.f32 %v803, 0.0
      %v866 = vmax.f32 %v806, 0.0
      %v867 = vmax.f32 %v811, 0.0
      %v868 = vmax.f32 %v814, 0.0
      %v869 = vmax.f32 %v819, 0.0
      %v870 = vmax.f32 %v822, 0.0
      %v871 = vmax.f32 %v827, 0.0
      %v872 = vmax.f32 %v830, 0.0
      %v873 = vmax.f32 %v835, 0.0
      %v874 = vmax.f32 %v838, 0.0
      %v875 = vmax.f32 %v843, 0.0
      %v876 = vmax.f32 %v846, 0.0
      %v877 = vmax.f32 %v851, 0.0
      %v878 = vmax.f32 %v854, 0.0
      %v879 = vmax.f32 %v859, 0.0
      %v880 = vmax.f32 %v862, 0.0
      %v881 = vadd.f32 %v680, %v865
      %v882 = vadd.f32 %v681, %v866
      %v883 = vadd.f32 %v682, %v867
      %v884 = vadd.f32 %v683, %v868
      %v885 = vadd.f32 %v684, %v869
      %v886 = vadd.f32 %v685, %v870
      %v887 = vadd.f32 %v686, %v871
      %v888 = vadd.f32 %v687, %v872
      %v889 = vadd.f32 %v881, %v873
      %v890 = vadd.f32 %v882, %v874
      %v891 = vadd.f32 %v883, %v875
      %v892 = vadd.f32 %v884, %v876
      %v893 = vadd.f32 %v885, %v877
      %v894 = vadd.f32 %v886, %v878
      %v895 = vadd.f32 %v887, %v879
      %v896 = vadd.f32 %v888, %v880
      %v897 = vld [vmem:[%s220 + $0xc0] sm:$0xf]
      %v898 = vld [vmem:[%s220 + $0xc4] sm:$0xf]
      %v899 = vld [vmem:[%s220 + $0xc8] sm:$0xf]
      %v900 = vld [vmem:[%s220 + $0xcc] sm:$0xf]
      %v901 = vld [vmem:[%s220 + $0xd0] sm:$0xf]
      %v902 = vld [vmem:[%s220 + $0xd4] sm:$0xf]
      %v903 = vld [vmem:[%s220 + $0xd8] sm:$0xf]
      %v904 = vld [vmem:[%s220 + $0xdc] sm:$0xf]
      %v905 = vld [vmem:[%s220 + $0xe0] sm:$0xf]
      %v906 = vld [vmem:[%s220 + $0xe4] sm:$0xf]
      %v907 = vld [vmem:[%s220 + $0xe8] sm:$0xf]
      %v908 = vld [vmem:[%s220 + $0xec] sm:$0xf]
      %v909 = vld [vmem:[%s220 + $0xf0] sm:$0xf]
      %v910 = vld [vmem:[%s220 + $0xf4] sm:$0xf]
      %v911 = vld [vmem:[%s220 + $0xf8] sm:$0xf]
      %v912 = vld [vmem:[%s220 + $0xfc] sm:$0xf]
      %v929 = vunpack.c.l.b16 %v897
      %v930 = vunpack.c.l.b16 %v898
      %v931 = vunpack.c.l.b16 %v899
      %v932 = vunpack.c.l.b16 %v900
      %v933 = vunpack.c.l.b16 %v901
      %v934 = vunpack.c.l.b16 %v902
      %v935 = vunpack.c.l.b16 %v903
      %v936 = vunpack.c.l.b16 %v904
      %v937 = vunpack.c.l.b16 %v905
      %v938 = vunpack.c.l.b16 %v906
      %v939 = vunpack.c.l.b16 %v907
      %v940 = vunpack.c.l.b16 %v908
      %v941 = vunpack.c.l.b16 %v909
      %v942 = vunpack.c.l.b16 %v910
      %v943 = vunpack.c.l.b16 %v911
      %v944 = vunpack.c.l.b16 %v912
      %v945 = vpack.c.b16 %v930, %v929
      %v946 = vpack.c.b16 %v932, %v931
      %v947 = vpack.c.b16 %v934, %v933
      %v948 = vpack.c.b16 %v936, %v935
      %v949 = vpack.c.b16 %v938, %v937
      %v950 = vpack.c.b16 %v940, %v939
      %v951 = vpack.c.b16 %v942, %v941
      %v952 = vpack.c.b16 %v944, %v943
      %v954 = vsel %vm325, %v945, 0
      %v957 = vsel %vm325, %v946, 0
      %v960 = vsel %vm325, %v947, 0
      %v963 = vsel %vm325, %v948, 0
      %v966 = vsel %vm325, %v949, 0
      %v969 = vsel %vm325, %v950, 0
      %v972 = vsel %vm325, %v951, 0
      %v975 = vsel %vm325, %v952, 0
      %977 = vmatprep.subr.bf16.mxu0 0
      %978 = vmatpush1.bf16.msra.mxu0 %v321
      %979 = vmatprep.subr.bf16.mxu0 0
      %980 = vmatpush1.bf16.msra.mxu0 %v322
      %981 = vmatprep.subr.bf16.mxu0 0
      %982 = vmatpush1.bf16.msra.mxu0 0
      %983 = vmatprep.subr.bf16.mxu0 0
      %984 = vmatpush1.bf16.msra.mxu0 0
      %985 = vmatprep.subr.bf16.mxu0 0
      %986 = vmatpush1.bf16.msra.mxu0 0
      %987 = vmatprep.subr.bf16.mxu0 0
      %988 = vmatpush1.bf16.msra.mxu0 0
      %989 = vmatprep.subr.bf16.mxu0 0
      %990 = vmatpush1.bf16.msra.mxu0 0
      %991 = vmatprep.subr.bf16.mxu0 0
      %992 = vmatpush1.bf16.msra.mxu0 0
      %993 = vmatprep.subr.bf16.mxu0 0
      %994 = vmatpush1.bf16.msra.mxu0 0
      %995 = vmatprep.subr.bf16.mxu0 0
      %996 = vmatpush1.bf16.msra.mxu0 0
      %997 = vmatprep.subr.bf16.mxu0 0
      %998 = vmatpush1.bf16.msra.mxu0 0
      %999 = vmatprep.subr.bf16.mxu0 0
      %1000 = vmatpush1.bf16.msra.mxu0 0
      %1001 = vmatprep.subr.bf16.mxu0 0
      %1002 = vmatpush1.bf16.msra.mxu0 0
      %1003 = vmatprep.subr.bf16.mxu0 0
      %1004 = vmatpush1.bf16.msra.mxu0 0
      %1005 = vmatprep.subr.bf16.mxu0 0
      %1006 = vmatpush1.bf16.msra.mxu0 0
      %1007 = vmatprep.subr.bf16.mxu0 0
      %1008 = vmatpush1.bf16.msra.mxu0 0
      %1009 = vmatprep.mubr.bf16.mxu0 0
      %1010 = vmatmul.mubr.bf16.gmra.mrb[0].mxu0 %v954
      %v1011 = vpop.f32.mrb[0].mxu0
      %v1012 = vadd.f32 %v271, %v1011
      %v1013 = vpop.f32.mrb[0].mxu0
      %v1014 = vpop.f32.mrb[0].mxu0
      %v1015 = vadd.f32 %v271, %v1014
      %v1016 = vpop.f32.mrb[0].mxu0
      %1017 = vmatprep.mubr.bf16.mxu0 0
      %1018 = vmatmul.mubr.bf16.gmra.mrb[0].mxu0 %v957
      %v1019 = vpop.f32.mrb[0].mxu0
      %v1020 = vadd.f32 %v271, %v1019
      %v1021 = vpop.f32.mrb[0].mxu0
      %v1022 = vpop.f32.mrb[0].mxu0
      %v1023 = vadd.f32 %v271, %v1022
      %v1024 = vpop.f32.mrb[0].mxu0
      %1025 = vmatprep.mubr.bf16.mxu0 0
      %1026 = vmatmul.mubr.bf16.gmra.mrb[0].mxu0 %v960
      %v1027 = vpop.f32.mrb[0].mxu0
      %v1028 = vadd.f32 %v271, %v1027
      %v1029 = vpop.f32.mrb[0].mxu0
      %v1030 = vpop.f32.mrb[0].mxu0
      %v1031 = vadd.f32 %v271, %v1030
      %v1032 = vpop.f32.mrb[0].mxu0
      %1033 = vmatprep.mubr.bf16.mxu0 0
      %1034 = vmatmul.mubr.bf16.gmra.mrb[0].mxu0 %v963
      %v1035 = vpop.f32.mrb[0].mxu0
      %v1036 = vadd.f32 %v271, %v1035
      %v1037 = vpop.f32.mrb[0].mxu0
      %v1038 = vpop.f32.mrb[0].mxu0
      %v1039 = vadd.f32 %v271, %v1038
      %v1040 = vpop.f32.mrb[0].mxu0
      %1041 = vmatprep.mubr.bf16.mxu0 0
      %1042 = vmatmul.mubr.bf16.gmra.mrb[0].mxu0 %v966
      %v1043 = vpop.f32.mrb[0].mxu0
      %v1044 = vadd.f32 %v271, %v1043
      %v1045 = vpop.f32.mrb[0].mxu0
      %v1046 = vpop.f32.mrb[0].mxu0
      %v1047 = vadd.f32 %v271, %v1046
      %v1048 = vpop.f32.mrb[0].mxu0
      %1049 = vmatprep.mubr.bf16.mxu0 0
      %1050 = vmatmul.mubr.bf16.gmra.mrb[0].mxu0 %v969
      %v1051 = vpop.f32.mrb[0].mxu0
      %v1052 = vadd.f32 %v271, %v1051
      %v1053 = vpop.f32.mrb[0].mxu0
      %v1054 = vpop.f32.mrb[0].mxu0
      %v1055 = vadd.f32 %v271, %v1054
      %v1056 = vpop.f32.mrb[0].mxu0
      %1057 = vmatprep.mubr.bf16.mxu0 0
      %1058 = vmatmul.mubr.bf16.gmra.mrb[0].mxu0 %v972
      %v1059 = vpop.f32.mrb[0].mxu0
      %v1060 = vadd.f32 %v271, %v1059
      %v1061 = vpop.f32.mrb[0].mxu0
      %v1062 = vpop.f32.mrb[0].mxu0
      %v1063 = vadd.f32 %v271, %v1062
      %v1064 = vpop.f32.mrb[0].mxu0
      %1065 = vmatprep.mubr.bf16.mxu0 0
      %1066 = vmatmul.mubr.bf16.gmra.mrb[0].mxu0 %v975
      %v1067 = vpop.f32.mrb[0].mxu0
      %v1068 = vadd.f32 %v271, %v1067
      %v1069 = vpop.f32.mrb[0].mxu0
      %v1070 = vpop.f32.mrb[0].mxu0
      %v1071 = vadd.f32 %v271, %v1070
      %v1072 = vpop.f32.mrb[0].mxu0
      %1073 = vdwg.mxu0
      %v1074 = vmax.f32 %v1012, 0.0
      %v1075 = vmax.f32 %v1015, 0.0
      %v1076 = vmax.f32 %v1020, 0.0
      %v1077 = vmax.f32 %v1023, 0.0
      %v1078 = vmax.f32 %v1028, 0.0
      %v1079 = vmax.f32 %v1031, 0.0
      %v1080 = vmax.f32 %v1036, 0.0
      %v1081 = vmax.f32 %v1039, 0.0
      %v1082 = vmax.f32 %v1044, 0.0
      %v1083 = vmax.f32 %v1047, 0.0
      %v1084 = vmax.f32 %v1052, 0.0
      %v1085 = vmax.f32 %v1055, 0.0
      %v1086 = vmax.f32 %v1060, 0.0
      %v1087 = vmax.f32 %v1063, 0.0
      %v1088 = vmax.f32 %v1068, 0.0
      %v1089 = vmax.f32 %v1071, 0.0
      %v1090 = vadd.f32 %v889, %v1074
      %v1091 = vadd.f32 %v890, %v1075
      %v1092 = vadd.f32 %v891, %v1076
      %v1093 = vadd.f32 %v892, %v1077
      %v1094 = vadd.f32 %v893, %v1078
      %v1095 = vadd.f32 %v894, %v1079
      %v1096 = vadd.f32 %v895, %v1080
      %v1097 = vadd.f32 %v896, %v1081
      %v1098 = vadd.f32 %v1090, %v1082
      %v1099 = vadd.f32 %v1091, %v1083
      %v1100 = vadd.f32 %v1092, %v1084
      %v1101 = vadd.f32 %v1093, %v1085
      %v1102 = vadd.f32 %v1094, %v1086
      %v1103 = vadd.f32 %v1095, %v1087
      %v1104 = vadd.f32 %v1096, %v1088
      %v1105 = vadd.f32 %v1097, %v1089
      %v1106 = vld [vmem:[%s220 + $0x100] sm:$0xf]
      %v1107 = vld [vmem:[%s220 + $0x104] sm:$0xf]
      %v1108 = vld [vmem:[%s220 + $0x108] sm:$0xf]
      %v1109 = vld [vmem:[%s220 + $0x10c] sm:$0xf]
      %v1110 = vld [vmem:[%s220 + $0x110] sm:$0xf]
      %v1111 = vld [vmem:[%s220 + $0x114] sm:$0xf]
      %v1112 = vld [vmem:[%s220 + $0x118] sm:$0xf]
      %v1113 = vld [vmem:[%s220 + $0x11c] sm:$0xf]
      %v1114 = vld [vmem:[%s220 + $0x120] sm:$0xf]
      %v1115 = vld [vmem:[%s220 + $0x124] sm:$0xf]
      %v1116 = vld [vmem:[%s220 + $0x128] sm:$0xf]
      %v1117 = vld [vmem:[%s220 + $0x12c] sm:$0xf]
      %v1118 = vld [vmem:[%s220 + $0x130] sm:$0xf]
      %v1119 = vld [vmem:[%s220 + $0x134] sm:$0xf]
      %v1120 = vld [vmem:[%s220 + $0x138] sm:$0xf]
      %v1121 = vld [vmem:[%s220 + $0x13c] sm:$0xf]
      %v1138 = vunpack.c.l.b16 %v1106
      %v1139 = vunpack.c.l.b16 %v1107
      %v1140 = vunpack.c.l.b16 %v1108
      %v1141 = vunpack.c.l.b16 %v1109
      %v1142 = vunpack.c.l.b16 %v1110
      %v1143 = vunpack.c.l.b16 %v1111
      %v1144 = vunpack.c.l.b16 %v1112
      %v1145 = vunpack.c.l.b16 %v1113
      %v1146 = vunpack.c.l.b16 %v1114
      %v1147 = vunpack.c.l.b16 %v1115
      %v1148 = vunpack.c.l.b16 %v1116
      %v1149 = vunpack.c.l.b16 %v1117
      %v1150 = vunpack.c.l.b16 %v1118
      %v1151 = vunpack.c.l.b16 %v1119
      %v1152 = vunpack.c.l.b16 %v1120
      %v1153 = vunpack.c.l.b16 %v1121
      %v1154 = vpack.c.b16 %v1139, %v1138
      %v1155 = vpack.c.b16 %v1141, %v1140
      %v1156 = vpack.c.b16 %v1143, %v1142
      %v1157 = vpack.c.b16 %v1145, %v1144
      %v1158 = vpack.c.b16 %v1147, %v1146
      %v1159 = vpack.c.b16 %v1149, %v1148
      %v1160 = vpack.c.b16 %v1151, %v1150
      %v1161 = vpack.c.b16 %v1153, %v1152
      %v1163 = vsel %vm325, %v1154, 0
      %v1166 = vsel %vm325, %v1155, 0
      %v1169 = vsel %vm325, %v1156, 0
      %v1172 = vsel %vm325, %v1157, 0
      %v1175 = vsel %vm325, %v1158, 0
      %v1178 = vsel %vm325, %v1159, 0
      %v1181 = vsel %vm325, %v1160, 0
      %v1184 = vsel %vm325, %v1161, 0
      %1186 = vmatprep.subr.bf16.mxu0 0
      %1187 = vmatpush1.bf16.msra.mxu0 %v321
      %1188 = vmatprep.subr.bf16.mxu0 0
      %1189 = vmatpush1.bf16.msra.mxu0 %v322
      %1190 = vmatprep.subr.bf16.mxu0 0
      %1191 = vmatpush1.bf16.msra.mxu0 0
      %1192 = vmatprep.subr.bf16.mxu0 0
      %1193 = vmatpush1.bf16.msra.mxu0 0
      %1194 = vmatprep.subr.bf16.mxu0 0
      %1195 = vmatpush1.bf16.msra.mxu0 0
      %1196 = vmatprep.subr.bf16.mxu0 0
      %1197 = vmatpush1.bf16.msra.mxu0 0
      %1198 = vmatprep.subr.bf16.mxu0 0
      %1199 = vmatpush1.bf16.msra.mxu0 0
      %1200 = vmatprep.subr.bf16.mxu0 0
      %1201 = vmatpush1.bf16.msra.mxu0 0
      %1202 = vmatprep.subr.bf16.mxu0 0
      %1203 = vmatpush1.bf16.msra.mxu0 0
      %1204 = vmatprep.subr.bf16.mxu0 0
      %1205 = vmatpush1.bf16.msra.mxu0 0
      %1206 = vmatprep.subr.bf16.mxu0 0
      %1207 = vmatpush1.bf16.msra.mxu0 0
      %1208 = vmatprep.subr.bf16.mxu0 0
      %1209 = vmatpush1.bf16.msra.mxu0 0
      %1210 = vmatprep.subr.bf16.mxu0 0
      %1211 = vmatpush1.bf16.msra.mxu0 0
      %1212 = vmatprep.subr.bf16.mxu0 0
      %1213 = vmatpush1.bf16.msra.mxu0 0
      %1214 = vmatprep.subr.bf16.mxu0 0
      %1215 = vmatpush1.bf16.msra.mxu0 0
      %1216 = vmatprep.subr.bf16.mxu0 0
      %1217 = vmatpush1.bf16.msra.mxu0 0
      %1218 = vmatprep.mubr.bf16.mxu0 0
      %1219 = vmatmul.mubr.bf16.gmra.mrb[0].mxu0 %v1163
      %v1220 = vpop.f32.mrb[0].mxu0
      %v1221 = vadd.f32 %v271, %v1220
      %v1222 = vpop.f32.mrb[0].mxu0
      %v1223 = vpop.f32.mrb[0].mxu0
      %v1224 = vadd.f32 %v271, %v1223
      %v1225 = vpop.f32.mrb[0].mxu0
      %1226 = vmatprep.mubr.bf16.mxu0 0
      %1227 = vmatmul.mubr.bf16.gmra.mrb[0].mxu0 %v1166
      %v1228 = vpop.f32.mrb[0].mxu0
      %v1229 = vadd.f32 %v271, %v1228
      %v1230 = vpop.f32.mrb[0].mxu0
      %v1231 = vpop.f32.mrb[0].mxu0
      %v1232 = vadd.f32 %v271, %v1231
      %v1233 = vpop.f32.mrb[0].mxu0
      %1234 = vmatprep.mubr.bf16.mxu0 0
      %1235 = vmatmul.mubr.bf16.gmra.mrb[0].mxu0 %v1169
      %v1236 = vpop.f32.mrb[0].mxu0
      %v1237 = vadd.f32 %v271, %v1236
      %v1238 = vpop.f32.mrb[0].mxu0
      %v1239 = vpop.f32.mrb[0].mxu0
      %v1240 = vadd.f32 %v271, %v1239
      %v1241 = vpop.f32.mrb[0].mxu0
      %1242 = vmatprep.mubr.bf16.mxu0 0
      %1243 = vmatmul.mubr.bf16.gmra.mrb[0].mxu0 %v1172
      %v1244 = vpop.f32.mrb[0].mxu0
      %v1245 = vadd.f32 %v271, %v1244
      %v1246 = vpop.f32.mrb[0].mxu0
      %v1247 = vpop.f32.mrb[0].mxu0
      %v1248 = vadd.f32 %v271, %v1247
      %v1249 = vpop.f32.mrb[0].mxu0
      %1250 = vmatprep.mubr.bf16.mxu0 0
      %1251 = vmatmul.mubr.bf16.gmra.mrb[0].mxu0 %v1175
      %v1252 = vpop.f32.mrb[0].mxu0
      %v1253 = vadd.f32 %v271, %v1252
      %v1254 = vpop.f32.mrb[0].mxu0
      %v1255 = vpop.f32.mrb[0].mxu0
      %v1256 = vadd.f32 %v271, %v1255
      %v1257 = vpop.f32.mrb[0].mxu0
      %1258 = vmatprep.mubr.bf16.mxu0 0
      %1259 = vmatmul.mubr.bf16.gmra.mrb[0].mxu0 %v1178
      %v1260 = vpop.f32.mrb[0].mxu0
      %v1261 = vadd.f32 %v271, %v1260
      %v1262 = vpop.f32.mrb[0].mxu0
      %v1263 = vpop.f32.mrb[0].mxu0
      %v1264 = vadd.f32 %v271, %v1263
      %v1265 = vpop.f32.mrb[0].mxu0
      %1266 = vmatprep.mubr.bf16.mxu0 0
      %1267 = vmatmul.mubr.bf16.gmra.mrb[0].mxu0 %v1181
      %v1268 = vpop.f32.mrb[0].mxu0
      %v1269 = vadd.f32 %v271, %v1268
      %v1270 = vpop.f32.mrb[0].mxu0
      %v1271 = vpop.f32.mrb[0].mxu0
      %v1272 = vadd.f32 %v271, %v1271
      %v1273 = vpop.f32.mrb[0].mxu0
      %1274 = vmatprep.mubr.bf16.mxu0 0
      %1275 = vmatmul.mubr.bf16.gmra.mrb[0].mxu0 %v1184
      %v1276 = vpop.f32.mrb[0].mxu0
      %v1277 = vadd.f32 %v271, %v1276
      %v1278 = vpop.f32.mrb[0].mxu0
      %v1279 = vpop.f32.mrb[0].mxu0
      %v1280 = vadd.f32 %v271, %v1279
      %v1281 = vpop.f32.mrb[0].mxu0
      %1282 = vdwg.mxu0
      %v1283 = vmax.f32 %v1221, 0.0
      %v1284 = vmax.f32 %v1224, 0.0
      %v1285 = vmax.f32 %v1229, 0.0
      %v1286 = vmax.f32 %v1232, 0.0
      %v1287 = vmax.f32 %v1237, 0.0
      %v1288 = vmax.f32 %v1240, 0.0
      %v1289 = vmax.f32 %v1245, 0.0
      %v1290 = vmax.f32 %v1248, 0.0
      %v1291 = vmax.f32 %v1253, 0.0
      %v1292 = vmax.f32 %v1256, 0.0
      %v1293 = vmax.f32 %v1261, 0.0
      %v1294 = vmax.f32 %v1264, 0.0
      %v1295 = vmax.f32 %v1269, 0.0
      %v1296 = vmax.f32 %v1272, 0.0
      %v1297 = vmax.f32 %v1277, 0.0
      %v1298 = vmax.f32 %v1280, 0.0
      %v1299 = vadd.f32 %v1098, %v1283
      %v1300 = vadd.f32 %v1099, %v1284
      %v1301 = vadd.f32 %v1100, %v1285
      %v1302 = vadd.f32 %v1101, %v1286
      %v1303 = vadd.f32 %v1102, %v1287
      %v1304 = vadd.f32 %v1103, %v1288
      %v1305 = vadd.f32 %v1104, %v1289
      %v1306 = vadd.f32 %v1105, %v1290
      %v1307 = vadd.f32 %v1299, %v1291
      %v1308 = vadd.f32 %v1300, %v1292
      %v1309 = vadd.f32 %v1301, %v1293
      %v1310 = vadd.f32 %v1302, %v1294
      %v1311 = vadd.f32 %v1303, %v1295
      %v1312 = vadd.f32 %v1304, %v1296
      %v1313 = vadd.f32 %v1305, %v1297
      %v1314 = vadd.f32 %v1306, %v1298
      %v1315 = vld [vmem:[%s220 + $0x140] sm:$0xf]
      %v1316 = vld [vmem:[%s220 + $0x144] sm:$0xf]
      %v1317 = vld [vmem:[%s220 + $0x148] sm:$0xf]
      %v1318 = vld [vmem:[%s220 + $0x14c] sm:$0xf]
      %v1319 = vld [vmem:[%s220 + $0x150] sm:$0xf]
      %v1320 = vld [vmem:[%s220 + $0x154] sm:$0xf]
      %v1321 = vld [vmem:[%s220 + $0x158] sm:$0xf]
      %v1322 = vld [vmem:[%s220 + $0x15c] sm:$0xf]
      %v1323 = vld [vmem:[%s220 + $0x160] sm:$0xf]
      %v1324 = vld [vmem:[%s220 + $0x164] sm:$0xf]
      %v1325 = vld [vmem:[%s220 + $0x168] sm:$0xf]
      %v1326 = vld [vmem:[%s220 + $0x16c] sm:$0xf]
      %v1327 = vld [vmem:[%s220 + $0x170] sm:$0xf]
      %v1328 = vld [vmem:[%s220 + $0x174] sm:$0xf]
      %v1329 = vld [vmem:[%s220 + $0x178] sm:$0xf]
      %v1330 = vld [vmem:[%s220 + $0x17c] sm:$0xf]
      %v1347 = vunpack.c.l.b16 %v1315
      %v1348 = vunpack.c.l.b16 %v1316
      %v1349 = vunpack.c.l.b16 %v1317
      %v1350 = vunpack.c.l.b16 %v1318
      %v1351 = vunpack.c.l.b16 %v1319
      %v1352 = vunpack.c.l.b16 %v1320
      %v1353 = vunpack.c.l.b16 %v1321
      %v1354 = vunpack.c.l.b16 %v1322
      %v1355 = vunpack.c.l.b16 %v1323
      %v1356 = vunpack.c.l.b16 %v1324
      %v1357 = vunpack.c.l.b16 %v1325
      %v1358 = vunpack.c.l.b16 %v1326
      %v1359 = vunpack.c.l.b16 %v1327
      %v1360 = vunpack.c.l.b16 %v1328
      %v1361 = vunpack.c.l.b16 %v1329
      %v1362 = vunpack.c.l.b16 %v1330
      %v1363 = vpack.c.b16 %v1348, %v1347
      %v1364 = vpack.c.b16 %v1350, %v1349
      %v1365 = vpack.c.b16 %v1352, %v1351
      %v1366 = vpack.c.b16 %v1354, %v1353
      %v1367 = vpack.c.b16 %v1356, %v1355
      %v1368 = vpack.c.b16 %v1358, %v1357
      %v1369 = vpack.c.b16 %v1360, %v1359
      %v1370 = vpack.c.b16 %v1362, %v1361
      %v1372 = vsel %vm325, %v1363, 0
      %v1375 = vsel %vm325, %v1364, 0
      %v1378 = vsel %vm325, %v1365, 0
      %v1381 = vsel %vm325, %v1366, 0
      %v1384 = vsel %vm325, %v1367, 0
      %v1387 = vsel %vm325, %v1368, 0
      %v1390 = vsel %vm325, %v1369, 0
      %v1393 = vsel %vm325, %v1370, 0
      %1395 = vmatprep.subr.bf16.mxu0 0
      %1396 = vmatpush1.bf16.msra.mxu0 %v321
      %1397 = vmatprep.subr.bf16.mxu0 0
      %1398 = vmatpush1.bf16.msra.mxu0 %v322
      %1399 = vmatprep.subr.bf16.mxu0 0
      %1400 = vmatpush1.bf16.msra.mxu0 0
      %1401 = vmatprep.subr.bf16.mxu0 0
      %1402 = vmatpush1.bf16.msra.mxu0 0
      %1403 = vmatprep.subr.bf16.mxu0 0
      %1404 = vmatpush1.bf16.msra.mxu0 0
      %1405 = vmatprep.subr.bf16.mxu0 0
      %1406 = vmatpush1.bf16.msra.mxu0 0
      %1407 = vmatprep.subr.bf16.mxu0 0
      %1408 = vmatpush1.bf16.msra.mxu0 0
      %1409 = vmatprep.subr.bf16.mxu0 0
      %1410 = vmatpush1.bf16.msra.mxu0 0
      %1411 = vmatprep.subr.bf16.mxu0 0
      %1412 = vmatpush1.bf16.msra.mxu0 0
      %1413 = vmatprep.subr.bf16.mxu0 0
      %1414 = vmatpush1.bf16.msra.mxu0 0
      %1415 = vmatprep.subr.bf16.mxu0 0
      %1416 = vmatpush1.bf16.msra.mxu0 0
      %1417 = vmatprep.subr.bf16.mxu0 0
      %1418 = vmatpush1.bf16.msra.mxu0 0
      %1419 = vmatprep.subr.bf16.mxu0 0
      %1420 = vmatpush1.bf16.msra.mxu0 0
      %1421 = vmatprep.subr.bf16.mxu0 0
      %1422 = vmatpush1.bf16.msra.mxu0 0
      %1423 = vmatprep.subr.bf16.mxu0 0
      %1424 = vmatpush1.bf16.msra.mxu0 0
      %1425 = vmatprep.subr.bf16.mxu0 0
      %1426 = vmatpush1.bf16.msra.mxu0 0
      %1427 = vmatprep.mubr.bf16.mxu0 0
      %1428 = vmatmul.mubr.bf16.gmra.mrb[0].mxu0 %v1372
      %v1429 = vpop.f32.mrb[0].mxu0
      %v1430 = vadd.f32 %v271, %v1429
      %v1431 = vpop.f32.mrb[0].mxu0
      %v1432 = vpop.f32.mrb[0].mxu0
      %v1433 = vadd.f32 %v271, %v1432
      %v1434 = vpop.f32.mrb[0].mxu0
      %1435 = vmatprep.mubr.bf16.mxu0 0
      %1436 = vmatmul.mubr.bf16.gmra.mrb[0].mxu0 %v1375
      %v1437 = vpop.f32.mrb[0].mxu0
      %v1438 = vadd.f32 %v271, %v1437
      %v1439 = vpop.f32.mrb[0].mxu0
      %v1440 = vpop.f32.mrb[0].mxu0
      %v1441 = vadd.f32 %v271, %v1440
      %v1442 = vpop.f32.mrb[0].mxu0
      %1443 = vmatprep.mubr.bf16.mxu0 0
      %1444 = vmatmul.mubr.bf16.gmra.mrb[0].mxu0 %v1378
      %v1445 = vpop.f32.mrb[0].mxu0
      %v1446 = vadd.f32 %v271, %v1445
      %v1447 = vpop.f32.mrb[0].mxu0
      %v1448 = vpop.f32.mrb[0].mxu0
      %v1449 = vadd.f32 %v271, %v1448
      %v1450 = vpop.f32.mrb[0].mxu0
      %1451 = vmatprep.mubr.bf16.mxu0 0
      %1452 = vmatmul.mubr.bf16.gmra.mrb[0].mxu0 %v1381
      %v1453 = vpop.f32.mrb[0].mxu0
      %v1454 = vadd.f32 %v271, %v1453
      %v1455 = vpop.f32.mrb[0].mxu0
      %v1456 = vpop.f32.mrb[0].mxu0
      %v1457 = vadd.f32 %v271, %v1456
      %v1458 = vpop.f32.mrb[0].mxu0
      %1459 = vmatprep.mubr.bf16.mxu0 0
      %1460 = vmatmul.mubr.bf16.gmra.mrb[0].mxu0 %v1384
      %v1461 = vpop.f32.mrb[0].mxu0
      %v1462 = vadd.f32 %v271, %v1461
      %v1463 = vpop.f32.mrb[0].mxu0
      %v1464 = vpop.f32.mrb[0].mxu0
      %v1465 = vadd.f32 %v271, %v1464
      %v1466 = vpop.f32.mrb[0].mxu0
      %1467 = vmatprep.mubr.bf16.mxu0 0
      %1468 = vmatmul.mubr.bf16.gmra.mrb[0].mxu0 %v1387
      %v1469 = vpop.f32.mrb[0].mxu0
      %v1470 = vadd.f32 %v271, %v1469
      %v1471 = vpop.f32.mrb[0].mxu0
      %v1472 = vpop.f32.mrb[0].mxu0
      %v1473 = vadd.f32 %v271, %v1472
      %v1474 = vpop.f32.mrb[0].mxu0
      %1475 = vmatprep.mubr.bf16.mxu0 0
      %1476 = vmatmul.mubr.bf16.gmra.mrb[0].mxu0 %v1390
      %v1477 = vpop.f32.mrb[0].mxu0
      %v1478 = vadd.f32 %v271, %v1477
      %v1479 = vpop.f32.mrb[0].mxu0
      %v1480 = vpop.f32.mrb[0].mxu0
      %v1481 = vadd.f32 %v271, %v1480
      %v1482 = vpop.f32.mrb[0].mxu0
      %1483 = vmatprep.mubr.bf16.mxu0 0
      %1484 = vmatmul.mubr.bf16.gmra.mrb[0].mxu0 %v1393
      %v1485 = vpop.f32.mrb[0].mxu0
      %v1486 = vadd.f32 %v271, %v1485
      %v1487 = vpop.f32.mrb[0].mxu0
      %v1488 = vpop.f32.mrb[0].mxu0
      %v1489 = vadd.f32 %v271, %v1488
      %v1490 = vpop.f32.mrb[0].mxu0
      %1491 = vdwg.mxu0
      %v1492 = vmax.f32 %v1430, 0.0
      %v1493 = vmax.f32 %v1433, 0.0
      %v1494 = vmax.f32 %v1438, 0.0
      %v1495 = vmax.f32 %v1441, 0.0
      %v1496 = vmax.f32 %v1446, 0.0
      %v1497 = vmax.f32 %v1449, 0.0
      %v1498 = vmax.f32 %v1454, 0.0
      %v1499 = vmax.f32 %v1457, 0.0
      %v1500 = vmax.f32 %v1462, 0.0
      %v1501 = vmax.f32 %v1465, 0.0
      %v1502 = vmax.f32 %v1470, 0.0
      %v1503 = vmax.f32 %v1473, 0.0
      %v1504 = vmax.f32 %v1478, 0.0
      %v1505 = vmax.f32 %v1481, 0.0
      %v1506 = vmax.f32 %v1486, 0.0
      %v1507 = vmax.f32 %v1489, 0.0
      %v1508 = vadd.f32 %v1307, %v1492
      %v1509 = vadd.f32 %v1308, %v1493
      %v1510 = vadd.f32 %v1309, %v1494
      %v1511 = vadd.f32 %v1310, %v1495
      %v1512 = vadd.f32 %v1311, %v1496
      %v1513 = vadd.f32 %v1312, %v1497
      %v1514 = vadd.f32 %v1313, %v1498
      %v1515 = vadd.f32 %v1314, %v1499
      %v1516 = vadd.f32 %v1508, %v1500
      %v1517 = vadd.f32 %v1509, %v1501
      %v1518 = vadd.f32 %v1510, %v1502
      %v1519 = vadd.f32 %v1511, %v1503
      %v1520 = vadd.f32 %v1512, %v1504
      %v1521 = vadd.f32 %v1513, %v1505
      %v1522 = vadd.f32 %v1514, %v1506
      %v1523 = vadd.f32 %v1515, %v1507
      %v1524 = vld [vmem:[%s220 + $0x180] sm:$0xf]
      %v1525 = vld [vmem:[%s220 + $0x184] sm:$0xf]
      %v1526 = vld [vmem:[%s220 + $0x188] sm:$0xf]
      %v1527 = vld [vmem:[%s220 + $0x18c] sm:$0xf]
      %v1528 = vld [vmem:[%s220 + $0x190] sm:$0xf]
      %v1529 = vld [vmem:[%s220 + $0x194] sm:$0xf]
      %v1530 = vld [vmem:[%s220 + $0x198] sm:$0xf]
      %v1531 = vld [vmem:[%s220 + $0x19c] sm:$0xf]
      %v1532 = vld [vmem:[%s220 + $0x1a0] sm:$0xf]
      %v1533 = vld [vmem:[%s220 + $0x1a4] sm:$0xf]
      %v1534 = vld [vmem:[%s220 + $0x1a8] sm:$0xf]
      %v1535 = vld [vmem:[%s220 + $0x1ac] sm:$0xf]
      %v1536 = vld [vmem:[%s220 + $0x1b0] sm:$0xf]
      %v1537 = vld [vmem:[%s220 + $0x1b4] sm:$0xf]
      %v1538 = vld [vmem:[%s220 + $0x1b8] sm:$0xf]
      %v1539 = vld [vmem:[%s220 + $0x1bc] sm:$0xf]
      %v1556 = vunpack.c.l.b16 %v1524
      %v1557 = vunpack.c.l.b16 %v1525
      %v1558 = vunpack.c.l.b16 %v1526
      %v1559 = vunpack.c.l.b16 %v1527
      %v1560 = vunpack.c.l.b16 %v1528
      %v1561 = vunpack.c.l.b16 %v1529
      %v1562 = vunpack.c.l.b16 %v1530
      %v1563 = vunpack.c.l.b16 %v1531
      %v1564 = vunpack.c.l.b16 %v1532
      %v1565 = vunpack.c.l.b16 %v1533
      %v1566 = vunpack.c.l.b16 %v1534
      %v1567 = vunpack.c.l.b16 %v1535
      %v1568 = vunpack.c.l.b16 %v1536
      %v1569 = vunpack.c.l.b16 %v1537
      %v1570 = vunpack.c.l.b16 %v1538
      %v1571 = vunpack.c.l.b16 %v1539
      %v1572 = vpack.c.b16 %v1557, %v1556
      %v1573 = vpack.c.b16 %v1559, %v1558
      %v1574 = vpack.c.b16 %v1561, %v1560
      %v1575 = vpack.c.b16 %v1563, %v1562
      %v1576 = vpack.c.b16 %v1565, %v1564
      %v1577 = vpack.c.b16 %v1567, %v1566
      %v1578 = vpack.c.b16 %v1569, %v1568
      %v1579 = vpack.c.b16 %v1571, %v1570
      %v1581 = vsel %vm325, %v1572, 0
      %v1584 = vsel %vm325, %v1573, 0
      %v1587 = vsel %vm325, %v1574, 0
      %v1590 = vsel %vm325, %v1575, 0
      %v1593 = vsel %vm325, %v1576, 0
      %v1596 = vsel %vm325, %v1577, 0
      %v1599 = vsel %vm325, %v1578, 0
      %v1602 = vsel %vm325, %v1579, 0
      %1604 = vmatprep.subr.bf16.mxu0 0
      %1605 = vmatpush1.bf16.msra.mxu0 %v321
      %1606 = vmatprep.subr.bf16.mxu0 0
      %1607 = vmatpush1.bf16.msra.mxu0 %v322
      %1608 = vmatprep.subr.bf16.mxu0 0
      %1609 = vmatpush1.bf16.msra.mxu0 0
      %1610 = vmatprep.subr.bf16.mxu0 0
      %1611 = vmatpush1.bf16.msra.mxu0 0
      %1612 = vmatprep.subr.bf16.mxu0 0
      %1613 = vmatpush1.bf16.msra.mxu0 0
      %1614 = vmatprep.subr.bf16.mxu0 0
      %1615 = vmatpush1.bf16.msra.mxu0 0
      %1616 = vmatprep.subr.bf16.mxu0 0
      %1617 = vmatpush1.bf16.msra.mxu0 0
      %1618 = vmatprep.subr.bf16.mxu0 0
      %1619 = vmatpush1.bf16.msra.mxu0 0
      %1620 = vmatprep.subr.bf16.mxu0 0
      %1621 = vmatpush1.bf16.msra.mxu0 0
      %1622 = vmatprep.subr.bf16.mxu0 0
      %1623 = vmatpush1.bf16.msra.mxu0 0
      %1624 = vmatprep.subr.bf16.mxu0 0
      %1625 = vmatpush1.bf16.msra.mxu0 0
      %1626 = vmatprep.subr.bf16.mxu0 0
      %1627 = vmatpush1.bf16.msra.mxu0 0
      %1628 = vmatprep.subr.bf16.mxu0 0
      %1629 = vmatpush1.bf16.msra.mxu0 0
      %1630 = vmatprep.subr.bf16.mxu0 0
      %1631 = vmatpush1.bf16.msra.mxu0 0
      %1632 = vmatprep.subr.bf16.mxu0 0
      %1633 = vmatpush1.bf16.msra.mxu0 0
      %1634 = vmatprep.subr.bf16.mxu0 0
      %1635 = vmatpush1.bf16.msra.mxu0 0
      %1636 = vmatprep.mubr.bf16.mxu0 0
      %1637 = vmatmul.mubr.bf16.gmra.mrb[0].mxu0 %v1581
      %v1638 = vpop.f32.mrb[0].mxu0
      %v1639 = vadd.f32 %v271, %v1638
      %v1640 = vpop.f32.mrb[0].mxu0
      %v1641 = vpop.f32.mrb[0].mxu0
      %v1642 = vadd.f32 %v271, %v1641
      %v1643 = vpop.f32.mrb[0].mxu0
      %1644 = vmatprep.mubr.bf16.mxu0 0
      %1645 = vmatmul.mubr.bf16.gmra.mrb[0].mxu0 %v1584
      %v1646 = vpop.f32.mrb[0].mxu0
      %v1647 = vadd.f32 %v271, %v1646
      %v1648 = vpop.f32.mrb[0].mxu0
      %v1649 = vpop.f32.mrb[0].mxu0
      %v1650 = vadd.f32 %v271, %v1649
      %v1651 = vpop.f32.mrb[0].mxu0
      %1652 = vmatprep.mubr.bf16.mxu0 0
      %1653 = vmatmul.mubr.bf16.gmra.mrb[0].mxu0 %v1587
      %v1654 = vpop.f32.mrb[0].mxu0
      %v1655 = vadd.f32 %v271, %v1654
      %v1656 = vpop.f32.mrb[0].mxu0
      %v1657 = vpop.f32.mrb[0].mxu0
      %v1658 = vadd.f32 %v271, %v1657
      %v1659 = vpop.f32.mrb[0].mxu0
      %1660 = vmatprep.mubr.bf16.mxu0 0
      %1661 = vmatmul.mubr.bf16.gmra.mrb[0].mxu0 %v1590
      %v1662 = vpop.f32.mrb[0].mxu0
      %v1663 = vadd.f32 %v271, %v1662
      %v1664 = vpop.f32.mrb[0].mxu0
      %v1665 = vpop.f32.mrb[0].mxu0
      %v1666 = vadd.f32 %v271, %v1665
      %v1667 = vpop.f32.mrb[0].mxu0
      %1668 = vmatprep.mubr.bf16.mxu0 0
      %1669 = vmatmul.mubr.bf16.gmra.mrb[0].mxu0 %v1593
      %v1670 = vpop.f32.mrb[0].mxu0
      %v1671 = vadd.f32 %v271, %v1670
      %v1672 = vpop.f32.mrb[0].mxu0
      %v1673 = vpop.f32.mrb[0].mxu0
      %v1674 = vadd.f32 %v271, %v1673
      %v1675 = vpop.f32.mrb[0].mxu0
      %1676 = vmatprep.mubr.bf16.mxu0 0
      %1677 = vmatmul.mubr.bf16.gmra.mrb[0].mxu0 %v1596
      %v1678 = vpop.f32.mrb[0].mxu0
      %v1679 = vadd.f32 %v271, %v1678
      %v1680 = vpop.f32.mrb[0].mxu0
      %v1681 = vpop.f32.mrb[0].mxu0
      %v1682 = vadd.f32 %v271, %v1681
      %v1683 = vpop.f32.mrb[0].mxu0
      %1684 = vmatprep.mubr.bf16.mxu0 0
      %1685 = vmatmul.mubr.bf16.gmra.mrb[0].mxu0 %v1599
      %v1686 = vpop.f32.mrb[0].mxu0
      %v1687 = vadd.f32 %v271, %v1686
      %v1688 = vpop.f32.mrb[0].mxu0
      %v1689 = vpop.f32.mrb[0].mxu0
      %v1690 = vadd.f32 %v271, %v1689
      %v1691 = vpop.f32.mrb[0].mxu0
      %1692 = vmatprep.mubr.bf16.mxu0 0
      %1693 = vmatmul.mubr.bf16.gmra.mrb[0].mxu0 %v1602
      %v1694 = vpop.f32.mrb[0].mxu0
      %v1695 = vadd.f32 %v271, %v1694
      %v1696 = vpop.f32.mrb[0].mxu0
      %v1697 = vpop.f32.mrb[0].mxu0
      %v1698 = vadd.f32 %v271, %v1697
      %v1699 = vpop.f32.mrb[0].mxu0
      %1700 = vdwg.mxu0
      %v1701 = vmax.f32 %v1639, 0.0
      %v1702 = vmax.f32 %v1642, 0.0
      %v1703 = vmax.f32 %v1647, 0.0
      %v1704 = vmax.f32 %v1650, 0.0
      %v1705 = vmax.f32 %v1655, 0.0
      %v1706 = vmax.f32 %v1658, 0.0
      %v1707 = vmax.f32 %v1663, 0.0
      %v1708 = vmax.f32 %v1666, 0.0
      %v1709 = vmax.f32 %v1671, 0.0
      %v1710 = vmax.f32 %v1674, 0.0
      %v1711 = vmax.f32 %v1679, 0.0
      %v1712 = vmax.f32 %v1682, 0.0
      %v1713 = vmax.f32 %v1687, 0.0
      %v1714 = vmax.f32 %v1690, 0.0
      %v1715 = vmax.f32 %v1695, 0.0
      %v1716 = vmax.f32 %v1698, 0.0
      %v1717 = vadd.f32 %v1516, %v1701
      %v1718 = vadd.f32 %v1517, %v1702
      %v1719 = vadd.f32 %v1518, %v1703
      %v1720 = vadd.f32 %v1519, %v1704
      %v1721 = vadd.f32 %v1520, %v1705
      %v1722 = vadd.f32 %v1521, %v1706
      %v1723 = vadd.f32 %v1522, %v1707
      %v1724 = vadd.f32 %v1523, %v1708
      %v1725 = vadd.f32 %v1717, %v1709
      %v1726 = vadd.f32 %v1718, %v1710
      %v1727 = vadd.f32 %v1719, %v1711
      %v1728 = vadd.f32 %v1720, %v1712
      %v1729 = vadd.f32 %v1721, %v1713
      %v1730 = vadd.f32 %v1722, %v1714
      %v1731 = vadd.f32 %v1723, %v1715
      %v1732 = vadd.f32 %v1724, %v1716
      %v1733 = vld [vmem:[%s220 + $0x1c0] sm:$0xf]
      %v1734 = vld [vmem:[%s220 + $0x1c4] sm:$0xf]
      %v1735 = vld [vmem:[%s220 + $0x1c8] sm:$0xf]
      %v1736 = vld [vmem:[%s220 + $0x1cc] sm:$0xf]
      %v1737 = vld [vmem:[%s220 + $0x1d0] sm:$0xf]
      %v1738 = vld [vmem:[%s220 + $0x1d4] sm:$0xf]
      %v1739 = vld [vmem:[%s220 + $0x1d8] sm:$0xf]
      %v1740 = vld [vmem:[%s220 + $0x1dc] sm:$0xf]
      %v1741 = vld [vmem:[%s220 + $0x1e0] sm:$0xf]
      %v1742 = vld [vmem:[%s220 + $0x1e4] sm:$0xf]
      %v1743 = vld [vmem:[%s220 + $0x1e8] sm:$0xf]
      %v1744 = vld [vmem:[%s220 + $0x1ec] sm:$0xf]
      %v1745 = vld [vmem:[%s220 + $0x1f0] sm:$0xf]
      %v1746 = vld [vmem:[%s220 + $0x1f4] sm:$0xf]
      %v1747 = vld [vmem:[%s220 + $0x1f8] sm:$0xf]
      %v1748 = vld [vmem:[%s220 + $0x1fc] sm:$0xf]
      %v1765 = vunpack.c.l.b16 %v1733
      %v1766 = vunpack.c.l.b16 %v1734
      %v1767 = vunpack.c.l.b16 %v1735
      %v1768 = vunpack.c.l.b16 %v1736
      %v1769 = vunpack.c.l.b16 %v1737
      %v1770 = vunpack.c.l.b16 %v1738
      %v1771 = vunpack.c.l.b16 %v1739
      %v1772 = vunpack.c.l.b16 %v1740
      %v1773 = vunpack.c.l.b16 %v1741
      %v1774 = vunpack.c.l.b16 %v1742
      %v1775 = vunpack.c.l.b16 %v1743
      %v1776 = vunpack.c.l.b16 %v1744
      %v1777 = vunpack.c.l.b16 %v1745
      %v1778 = vunpack.c.l.b16 %v1746
      %v1779 = vunpack.c.l.b16 %v1747
      %v1780 = vunpack.c.l.b16 %v1748
      %v1781 = vpack.c.b16 %v1766, %v1765
      %v1782 = vpack.c.b16 %v1768, %v1767
      %v1783 = vpack.c.b16 %v1770, %v1769
      %v1784 = vpack.c.b16 %v1772, %v1771
      %v1785 = vpack.c.b16 %v1774, %v1773
      %v1786 = vpack.c.b16 %v1776, %v1775
      %v1787 = vpack.c.b16 %v1778, %v1777
      %v1788 = vpack.c.b16 %v1780, %v1779
      %v1790 = vsel %vm325, %v1781, 0
      %v1793 = vsel %vm325, %v1782, 0
      %v1796 = vsel %vm325, %v1783, 0
      %v1799 = vsel %vm325, %v1784, 0
      %v1802 = vsel %vm325, %v1785, 0
      %v1805 = vsel %vm325, %v1786, 0
      %v1808 = vsel %vm325, %v1787, 0
      %v1811 = vsel %vm325, %v1788, 0
      %1813 = vmatprep.subr.bf16.mxu0 0
      %1814 = vmatpush1.bf16.msra.mxu0 %v321
      %1815 = vmatprep.subr.bf16.mxu0 0
      %1816 = vmatpush1.bf16.msra.mxu0 %v322
      %1817 = vmatprep.subr.bf16.mxu0 0
      %1818 = vmatpush1.bf16.msra.mxu0 0
      %1819 = vmatprep.subr.bf16.mxu0 0
      %1820 = vmatpush1.bf16.msra.mxu0 0
      %1821 = vmatprep.subr.bf16.mxu0 0
      %1822 = vmatpush1.bf16.msra.mxu0 0
      %1823 = vmatprep.subr.bf16.mxu0 0
      %1824 = vmatpush1.bf16.msra.mxu0 0
      %1825 = vmatprep.subr.bf16.mxu0 0
      %1826 = vmatpush1.bf16.msra.mxu0 0
      %1827 = vmatprep.subr.bf16.mxu0 0
      %1828 = vmatpush1.bf16.msra.mxu0 0
      %1829 = vmatprep.subr.bf16.mxu0 0
      %1830 = vmatpush1.bf16.msra.mxu0 0
      %1831 = vmatprep.subr.bf16.mxu0 0
      %1832 = vmatpush1.bf16.msra.mxu0 0
      %1833 = vmatprep.subr.bf16.mxu0 0
      %1834 = vmatpush1.bf16.msra.mxu0 0
      %1835 = vmatprep.subr.bf16.mxu0 0
      %1836 = vmatpush1.bf16.msra.mxu0 0
      %1837 = vmatprep.subr.bf16.mxu0 0
      %1838 = vmatpush1.bf16.msra.mxu0 0
      %1839 = vmatprep.subr.bf16.mxu0 0
      %1840 = vmatpush1.bf16.msra.mxu0 0
      %1841 = vmatprep.subr.bf16.mxu0 0
      %1842 = vmatpush1.bf16.msra.mxu0 0
      %1843 = vmatprep.subr.bf16.mxu0 0
      %1844 = vmatpush1.bf16.msra.mxu0 0
      %1845 = vmatprep.mubr.bf16.mxu0 0
      %1846 = vmatmul.mubr.bf16.gmra.mrb[0].mxu0 %v1790
      %v1847 = vpop.f32.mrb[0].mxu0
      %v1848 = vadd.f32 %v271, %v1847
      %v1849 = vpop.f32.mrb[0].mxu0
      %v1850 = vpop.f32.mrb[0].mxu0
      %v1851 = vadd.f32 %v271, %v1850
      %v1852 = vpop.f32.mrb[0].mxu0
      %1853 = vmatprep.mubr.bf16.mxu0 0
      %1854 = vmatmul.mubr.bf16.gmra.mrb[0].mxu0 %v1793
      %v1855 = vpop.f32.mrb[0].mxu0
      %v1856 = vadd.f32 %v271, %v1855
      %v1857 = vpop.f32.mrb[0].mxu0
      %v1858 = vpop.f32.mrb[0].mxu0
      %v1859 = vadd.f32 %v271, %v1858
      %v1860 = vpop.f32.mrb[0].mxu0
      %1861 = vmatprep.mubr.bf16.mxu0 0
      %1862 = vmatmul.mubr.bf16.gmra.mrb[0].mxu0 %v1796
      %v1863 = vpop.f32.mrb[0].mxu0
      %v1864 = vadd.f32 %v271, %v1863
      %v1865 = vpop.f32.mrb[0].mxu0
      %v1866 = vpop.f32.mrb[0].mxu0
      %v1867 = vadd.f32 %v271, %v1866
      %v1868 = vpop.f32.mrb[0].mxu0
      %1869 = vmatprep.mubr.bf16.mxu0 0
      %1870 = vmatmul.mubr.bf16.gmra.mrb[0].mxu0 %v1799
      %v1871 = vpop.f32.mrb[0].mxu0
      %v1872 = vadd.f32 %v271, %v1871
      %v1873 = vpop.f32.mrb[0].mxu0
      %v1874 = vpop.f32.mrb[0].mxu0
      %v1875 = vadd.f32 %v271, %v1874
      %v1876 = vpop.f32.mrb[0].mxu0
      %1877 = vmatprep.mubr.bf16.mxu0 0
      %1878 = vmatmul.mubr.bf16.gmra.mrb[0].mxu0 %v1802
      %v1879 = vpop.f32.mrb[0].mxu0
      %v1880 = vadd.f32 %v271, %v1879
      %v1881 = vpop.f32.mrb[0].mxu0
      %v1882 = vpop.f32.mrb[0].mxu0
      %v1883 = vadd.f32 %v271, %v1882
      %v1884 = vpop.f32.mrb[0].mxu0
      %1885 = vmatprep.mubr.bf16.mxu0 0
      %1886 = vmatmul.mubr.bf16.gmra.mrb[0].mxu0 %v1805
      %v1887 = vpop.f32.mrb[0].mxu0
      %v1888 = vadd.f32 %v271, %v1887
      %v1889 = vpop.f32.mrb[0].mxu0
      %v1890 = vpop.f32.mrb[0].mxu0
      %v1891 = vadd.f32 %v271, %v1890
      %v1892 = vpop.f32.mrb[0].mxu0
      %1893 = vmatprep.mubr.bf16.mxu0 0
      %1894 = vmatmul.mubr.bf16.gmra.mrb[0].mxu0 %v1808
      %v1895 = vpop.f32.mrb[0].mxu0
      %v1896 = vadd.f32 %v271, %v1895
      %v1897 = vpop.f32.mrb[0].mxu0
      %v1898 = vpop.f32.mrb[0].mxu0
      %v1899 = vadd.f32 %v271, %v1898
      %v1900 = vpop.f32.mrb[0].mxu0
      %1901 = vmatprep.mubr.bf16.mxu0 0
      %1902 = vmatmul.mubr.bf16.gmra.mrb[0].mxu0 %v1811
      %v1903 = vpop.f32.mrb[0].mxu0
      %v1904 = vadd.f32 %v271, %v1903
      %v1905 = vpop.f32.mrb[0].mxu0
      %v1906 = vpop.f32.mrb[0].mxu0
      %v1907 = vadd.f32 %v271, %v1906
      %v1908 = vpop.f32.mrb[0].mxu0
      %1909 = vdwg.mxu0
      %v1910 = vmax.f32 %v1848, 0.0
      %v1911 = vmax.f32 %v1851, 0.0
      %v1912 = vmax.f32 %v1856, 0.0
      %v1913 = vmax.f32 %v1859, 0.0
      %v1914 = vmax.f32 %v1864, 0.0
      %v1915 = vmax.f32 %v1867, 0.0
      %v1916 = vmax.f32 %v1872, 0.0
      %v1917 = vmax.f32 %v1875, 0.0
      %v1918 = vmax.f32 %v1880, 0.0
      %v1919 = vmax.f32 %v1883, 0.0
      %v1920 = vmax.f32 %v1888, 0.0
      %v1921 = vmax.f32 %v1891, 0.0
      %v1922 = vmax.f32 %v1896, 0.0
      %v1923 = vmax.f32 %v1899, 0.0
      %v1924 = vmax.f32 %v1904, 0.0
      %v1925 = vmax.f32 %v1907, 0.0
      %v1926 = vadd.f32 %v1725, %v1910
      %v1927 = vadd.f32 %v1726, %v1911
      %v1928 = vadd.f32 %v1727, %v1912
      %v1929 = vadd.f32 %v1728, %v1913
      %v1930 = vadd.f32 %v1729, %v1914
      %v1931 = vadd.f32 %v1730, %v1915
      %v1932 = vadd.f32 %v1731, %v1916
      %v1933 = vadd.f32 %v1732, %v1917
      %v1934 = vadd.f32 %v1926, %v1918
      %v1935 = vadd.f32 %v1927, %v1919
      %v1936 = vadd.f32 %v1928, %v1920
      %v1937 = vadd.f32 %v1929, %v1921
      %v1938 = vadd.f32 %v1930, %v1922
      %v1939 = vadd.f32 %v1931, %v1923
      %v1940 = vadd.f32 %v1932, %v1924
      %v1941 = vadd.f32 %v1933, %v1925
      %v1942 = vmul.f32 %v1934, 0.0625
      %v1943 = vmul.f32 %v1935, 0.0625
      %v1944 = vmul.f32 %v1936, 0.0625
      %v1945 = vmul.f32 %v1937, 0.0625
      %v1946 = vmul.f32 %v1938, 0.0625
      %v1947 = vmul.f32 %v1939, 0.0625
      %v1948 = vmul.f32 %v1940, 0.0625
      %v1949 = vmul.f32 %v1941, 0.0625
      %v1950 = vpack.c.bf16 %v1943, %v1942
      %v1951 = vpack.c.bf16 %v1945, %v1944
      %v1952 = vpack.c.bf16 %v1947, %v1946
      %v1953 = vpack.c.bf16 %v1949, %v1948
      %v1955 = vlaneseq
      %v1956 = vshrl.u32 %v1955, 7
      %v1957 = vsub.s32 0, %v1956
      %v1958 = vrot.slane %v250, %v1957
      %v1976 = vunpack.c.l.b16 %v234
      %v1977 = vunpack.c.l.b16 %v235
      %v1978 = vunpack.c.l.b16 %v236
      %v1979 = vunpack.c.l.b16 %v237
      %v1980 = vunpack.c.l.b16 %v238
      %v1981 = vunpack.c.l.b16 %v239
      %v1982 = vunpack.c.l.b16 %v240
      %v1983 = vunpack.c.l.b16 %v241
      %v1984 = vunpack.c.l.b16 %v242
      %v1985 = vunpack.c.l.b16 %v243
      %v1986 = vunpack.c.l.b16 %v244
      %v1987 = vunpack.c.l.b16 %v245
      %v1988 = vunpack.c.l.b16 %v246
      %v1989 = vunpack.c.l.b16 %v247
      %v1990 = vunpack.c.l.b16 %v248
      %v1991 = vunpack.c.l.b16 %v249
      %v1992 = vpack.c.b16 %v1977, %v1976
      %v1993 = vpack.c.b16 %v1979, %v1978
      %v1994 = vpack.c.b16 %v1981, %v1980
      %v1995 = vpack.c.b16 %v1983, %v1982
      %v1996 = vpack.c.b16 %v1985, %v1984
      %v1997 = vpack.c.b16 %v1987, %v1986
      %v1998 = vpack.c.b16 %v1989, %v1988
      %v1999 = vpack.c.b16 %v1991, %v1990
      %2008 = vmatprep.subr.bf16.mxu0 0
      %2009 = vmatpush1.bf16.msra.mxu0 %v1992
      %2010 = vmatprep.subr.bf16.mxu0 0
      %2011 = vmatpush1.bf16.msra.mxu0 %v1993
      %2012 = vmatprep.subr.bf16.mxu0 0
      %2013 = vmatpush1.bf16.msra.mxu0 %v1994
      %2014 = vmatprep.subr.bf16.mxu0 0
      %2015 = vmatpush1.bf16.msra.mxu0 %v1995
      %2016 = vmatprep.subr.bf16.mxu0 0
      %2017 = vmatpush1.bf16.msra.mxu0 %v1996
      %2018 = vmatprep.subr.bf16.mxu0 0
      %2019 = vmatpush1.bf16.msra.mxu0 %v1997
      %2020 = vmatprep.subr.bf16.mxu0 0
      %2021 = vmatpush1.bf16.msra.mxu0 %v1998
      %2022 = vmatprep.subr.bf16.mxu0 0
      %2023 = vmatpush1.bf16.msra.mxu0 %v1999
      %2024 = vmatprep.subr.bf16.mxu0 0
      %2025 = vmatpush1.bf16.msra.mxu0 0
      %2026 = vmatprep.subr.bf16.mxu0 0
      %2027 = vmatpush1.bf16.msra.mxu0 0
      %2028 = vmatprep.subr.bf16.mxu0 0
      %2029 = vmatpush1.bf16.msra.mxu0 0
      %2030 = vmatprep.subr.bf16.mxu0 0
      %2031 = vmatpush1.bf16.msra.mxu0 0
      %2032 = vmatprep.subr.bf16.mxu0 0
      %2033 = vmatpush1.bf16.msra.mxu0 0
      %2034 = vmatprep.subr.bf16.mxu0 0
      %2035 = vmatpush1.bf16.msra.mxu0 0
      %2036 = vmatprep.subr.bf16.mxu0 0
      %2037 = vmatpush1.bf16.msra.mxu0 0
      %2038 = vmatprep.subr.bf16.mxu0 0
      %2039 = vmatpush1.bf16.msra.mxu0 0
      %2040 = vmatprep.mubr.bf16.mxu0 0
      %2041 = vmatmul.mubr.bf16.gmra.mrb[0].mxu0 %v1950
      %v2042 = vpop.f32.mrb[0].mxu0
      %v2043 = vadd.f32 %v1958, %v2042
      %v2044 = vpop.f32.mrb[0].mxu0
      %v2045 = vpop.f32.mrb[0].mxu0
      %v2046 = vadd.f32 %v1958, %v2045
      %v2047 = vpop.f32.mrb[0].mxu0
      %2048 = vmatprep.mubr.bf16.mxu0 0
      %2049 = vmatmul.mubr.bf16.gmra.mrb[0].mxu0 %v1951
      %v2050 = vpop.f32.mrb[0].mxu0
      %v2051 = vadd.f32 %v1958, %v2050
      %v2052 = vpop.f32.mrb[0].mxu0
      %v2053 = vpop.f32.mrb[0].mxu0
      %v2054 = vadd.f32 %v1958, %v2053
      %v2055 = vpop.f32.mrb[0].mxu0
      %2056 = vmatprep.mubr.bf16.mxu0 0
      %2057 = vmatmul.mubr.bf16.gmra.mrb[0].mxu0 %v1952
      %v2058 = vpop.f32.mrb[0].mxu0
      %v2059 = vadd.f32 %v1958, %v2058
      %v2060 = vpop.f32.mrb[0].mxu0
      %v2061 = vpop.f32.mrb[0].mxu0
      %v2062 = vadd.f32 %v1958, %v2061
      %v2063 = vpop.f32.mrb[0].mxu0
      %2064 = vmatprep.mubr.bf16.mxu0 0
      %2065 = vmatmul.mubr.bf16.gmra.mrb[0].mxu0 %v1953
      %v2066 = vpop.f32.mrb[0].mxu0
      %v2067 = vadd.f32 %v1958, %v2066
      %v2068 = vpop.f32.mrb[0].mxu0
      %v2069 = vpop.f32.mrb[0].mxu0
      %v2070 = vadd.f32 %v1958, %v2069
      %v2071 = vpop.f32.mrb[0].mxu0
      %2072 = vdwg.mxu0
      %2073 = vmax.xlane.f32.xlu0 %v2043
      %v2074 = vpop.xlane.xlu0 %2073
      %2075 = vmax.xlane.f32.xlu0 %v2046
      %v2076 = vpop.xlane.xlu0 %2075
      %2077 = vmax.xlane.f32.xlu0 %v2051
      %v2078 = vpop.xlane.xlu0 %2077
      %2079 = vmax.xlane.f32.xlu0 %v2054
      %v2080 = vpop.xlane.xlu0 %2079
      %2081 = vmax.xlane.f32.xlu0 %v2059
      %v2082 = vpop.xlane.xlu0 %2081
      %2083 = vmax.xlane.f32.xlu0 %v2062
      %v2084 = vpop.xlane.xlu0 %2083
      %2085 = vmax.xlane.f32.xlu0 %v2067
      %v2086 = vpop.xlane.xlu0 %2085
      %2087 = vmax.xlane.f32.xlu0 %v2070
      %v2088 = vpop.xlane.xlu0 %2087
      %v2089 = vsub.f32 %v2043, %v2074
      %v2090 = vsub.f32 %v2046, %v2076
      %v2091 = vsub.f32 %v2051, %v2078
      %v2092 = vsub.f32 %v2054, %v2080
      %v2093 = vsub.f32 %v2059, %v2082
      %v2094 = vsub.f32 %v2062, %v2084
      %v2095 = vsub.f32 %v2067, %v2086
      %v2096 = vsub.f32 %v2070, %v2088
      %v2097 = vmul.f32 %v2089, 1.442695
      %v2098 = vpow.pop %v2097
      %v2099 = vmul.f32 %v2090, 1.442695
      %v2100 = vpow.pop %v2099
      %v2101 = vmul.f32 %v2091, 1.442695
      %v2102 = vpow.pop %v2101
      %v2103 = vmul.f32 %v2092, 1.442695
      %v2104 = vpow.pop %v2103
      %v2105 = vmul.f32 %v2093, 1.442695
      %v2106 = vpow.pop %v2105
      %v2107 = vmul.f32 %v2094, 1.442695
      %v2108 = vpow.pop %v2107
      %v2109 = vmul.f32 %v2095, 1.442695
      %v2110 = vpow.pop %v2109
      %v2111 = vmul.f32 %v2096, 1.442695
      %v2112 = vpow.pop %v2111
      %2113 = vadd.xlane.f32.xlu0 %v2098
      %v2114 = vpop.xlane.xlu0 %2113
      %2115 = vadd.xlane.f32.xlu0 %v2100
      %v2116 = vpop.xlane.xlu0 %2115
      %2117 = vadd.xlane.f32.xlu0 %v2102
      %v2118 = vpop.xlane.xlu0 %2117
      %2119 = vadd.xlane.f32.xlu0 %v2104
      %v2120 = vpop.xlane.xlu0 %2119
      %2121 = vadd.xlane.f32.xlu0 %v2106
      %v2122 = vpop.xlane.xlu0 %2121
      %2123 = vadd.xlane.f32.xlu0 %v2108
      %v2124 = vpop.xlane.xlu0 %2123
      %2125 = vadd.xlane.f32.xlu0 %v2110
      %v2126 = vpop.xlane.xlu0 %2125
      %2127 = vadd.xlane.f32.xlu0 %v2112
      %v2128 = vpop.xlane.xlu0 %2127
      %v2129 = vrcp.pop %v2114
      %v2130 = vmul.f32 %v2098, %v2129
      %v2131 = vrcp.pop %v2116
      %v2132 = vmul.f32 %v2100, %v2131
      %v2133 = vrcp.pop %v2118
      %v2134 = vmul.f32 %v2102, %v2133
      %v2135 = vrcp.pop %v2120
      %v2136 = vmul.f32 %v2104, %v2135
      %v2137 = vrcp.pop %v2122
      %v2138 = vmul.f32 %v2106, %v2137
      %v2139 = vrcp.pop %v2124
      %v2140 = vmul.f32 %v2108, %v2139
      %v2141 = vrcp.pop %v2126
      %v2142 = vmul.f32 %v2110, %v2141
      %v2143 = vrcp.pop %v2128
      %v2144 = vmul.f32 %v2112, %v2143
      %2145 = vst [vmem:[%s226] sm:$0xff] %v2130
      %2146 = vst [vmem:[%s226 + $0x8] sm:$0xff] %v2132
      %2147 = vst [vmem:[%s226 + $0x10] sm:$0xff] %v2134
      %2148 = vst [vmem:[%s226 + $0x18] sm:$0xff] %v2136
      %2149 = vst [vmem:[%s226 + $0x20] sm:$0xff] %v2138
      %2150 = vst [vmem:[%s226 + $0x28] sm:$0xff] %v2140
      %2151 = vst [vmem:[%s226 + $0x30] sm:$0xff] %v2142
      %2152 = vst [vmem:[%s226 + $0x38] sm:$0xff] %v2144
      %s2153 = smul.u32 8, %s16
      %p2154 = scmp.lt.s32.totalorder %s2153, 15
      %s2155 = scalar_select %p2154, %s2153, 15
      %s2156 = smul.addr %s2155, 8
      %s2157 = scalar_lea.vmem %s5, %s2156
      // Predicated region
      $region41: #{base_recognizer_forward.1} parent=39 // pred_check
        %p2158 = pneg %p144
      $region42: #{base_recognizer_forward.1} parent=39 // pred_check_branch
        %2160 = sbr.rel (%p2158) target = $region44
      $region43: #{base_recognizer_forward.1} parent=39 // pred_region
        %s2161 = smul.u32 8, %s16
      $region44: #{base_recognizer_forward.1} parent=39 // pred_fallthru
        _
    $region40: #{base_recognizer_forward.1} parent=5 // pred_fallthru
      _
    %p2162 = scmp.le.s32.totalorder 2, %s11
    // Predicated region
    $region45: #{base_recognizer_forward.1} parent=5 // pred_check
      %p2163 = pneg %p2162
    $region46: #{base_recognizer_forward.1} parent=5 // pred_check_branch
      %2165 = sbr.rel (%p2163) target = $region48
    $region47: #{base_recognizer_forward.1} parent=5 // pred_region
      %s2166 = ssub.s32 %s11, 2
      // Predicated region
      $region49: #{base_recognizer_forward.1} parent=47 // pred_check
        %p2167 = pneg %p150
      $region50: #{base_recognizer_forward.1} parent=47 // pred_check_branch
        %2169 = sbr.rel (%p2167) target = $region52
      $region51: #{base_recognizer_forward.1} parent=47 // pred_region
        %s2170 = smul.u32 8, %s17
        %p2171 = scmp.lt.s32.totalorder %s2170, 15
        %s2172 = scalar_select %p2171, %s2170, 15
        %s2173 = smul.addr %s2172, 8
        %s2174 = scalar_lea.vmem %s5, %s2173
      $region52: #{base_recognizer_forward.1} parent=47 // pred_fallthru
        _
    $region48: #{base_recognizer_forward.1} parent=5 // pred_fallthru
      _
  $region6: #{base_recognizer_forward.1} parent=0 // loop_footer
    %s15 = sadd.s32 1, %s11
  $region7: #{base_recognizer_forward.1} parent=0 // loop_footer_branch
    %10 = sbr.rel target = $region3
  $region8: #{base_recognizer_forward.1} parent=0 // loop_exit
    _

</llo_original>
